<compile_context>
chip_gen: v5e
topology: v5e:2x2
jax: 0.10.0
libtpu: 0.0.40
codegen_flags: <defaults>
</compile_context>

<pallas_src>
import functools
import math

import jax
import jax.numpy as jnp
from jax import lax
from jax.experimental import pallas as pl
from jax.experimental.pallas import tpu as pltpu  # noqa: F401  (kept for memory-space/params use)


def _round_up(n, m):
    return ((n + m - 1) // m) * m


# ------------------------------------------------------------------------------------------------
# Fused kernel: VQEncoderV5 -> Quantizer -> VQDecoderV5, whole (B*T) row block in one invocation.
# ------------------------------------------------------------------------------------------------
def _fused_vqvae_kernel(
    x_ref, w_ref, b_ref, cb_ref, e2_ref,        # inputs  (all resident in VMEM)
    dense_ref, stats_ref,                        # outputs (lane-dense merged blocks)
    *, batch, seq_len, cmax, n_layer, n_codes, out_width, stat_width,
):
    rows = batch * seq_len
    T = seq_len

    # Per-row temporal position.  The masks realise the Conv1d(padding=1) zero halo AND stop
    # the rolled taps from leaking rows across batch elements (computed once, reused 13x).
    t_idx = lax.broadcasted_iota(jnp.int32, (rows, 1), 0) % T
    not_first = t_idx != 0            # row has a valid x[t-1]
    not_last = t_idx != (T - 1)       # row has a valid x[t+1]

    layer_ctr = [0]

    def conv(h, *, lrelu, residual=None):
        """Conv1d(k=3, s=1, p=1): in-vreg rolled taps -> one (rows, 3C) @ (3C, C) MXU dot."""
        l = layer_ctr[0]
        layer_ctr[0] = l + 1
        h_prev = jnp.where(not_first, jnp.roll(h, 1, axis=0), 0.0)    # x[t-1], zero at t==0
        h_next = jnp.where(not_last, jnp.roll(h, -1, axis=0), 0.0)    # x[t+1], zero at t==T-1
        patch = jnp.concatenate([h_prev, h, h_next], axis=1).astype(jnp.bfloat16)
        acc = jnp.dot(patch, w_ref[l], preferred_element_type=jnp.float32)
        acc = acc + b_ref[l]                                          # (1, C) broadcast, f32
        if lrelu:
            acc = jnp.where(acc >= 0.0, acc, 0.2 * acc)               # LeakyReLU(0.2), f32
        if residual is not None:
            acc = acc + residual
        return acc

    def res_block(h):
        y = conv(h, lrelu=True)
        return conv(y, lrelu=False, residual=h)

    # ---------------- VQEncoderV5: n_layer x [Conv -> LeakyReLU -> ResBlock] --------------------
    h = x_ref[...]                                                    # (rows, CMAX) f32
    for _ in range(n_layer):
        h = conv(h, lrelu=True)
        h = res_block(h)

    # ---------------- Quantizer -----------------------------------------------------------------
    z = h                                                             # (rows, C)
    e = cb_ref[...]                                                   # (K, C) f32
    z2 = jnp.sum(z * z, axis=1, keepdims=True)                        # (rows, 1)
    e2 = e2_ref[...]                                                  # (1, K), precomputed
    cross = lax.dot_general(z.astype(jnp.bfloat16), e.astype(jnp.bfloat16),
                            (((1,), (1,)), ((), ())),
                            preferred_element_type=jnp.float32)       # (rows, K) = z @ e.T
    d = z2 + e2 - 2.0 * cross
    min_d = jnp.min(d, axis=1, keepdims=True)
    col = lax.broadcasted_iota(jnp.int32, d.shape, 1)
    idx = jnp.min(jnp.where(d <= min_d, col, n_codes), axis=1, keepdims=True)  # first argmin
    onehot = (col == idx).astype(jnp.float32)                         # (rows, K)
    zq = jnp.dot(onehot, e, preferred_element_type=jnp.float32)       # exact codebook rows (f32)

    diff = zq - z
    sse = jnp.sum(jnp.sum(diff * diff, axis=1, keepdims=True), axis=0, keepdims=True)  # (1, 1)
    counts = jnp.sum(onehot, axis=0, keepdims=True)                                    # (1, K)

    # ---------------- VQDecoderV5: 2 x ResBlock -> n_layer x [Conv -> LReLU] -> final Conv ------
    h = zq
    for _ in range(2):
        h = res_block(h)
    for _ in range(n_layer):
        h = conv(h, lrelu=True)
    h = conv(h, lrelu=False)

    # ---------------- Lane-dense merged writebacks ----------------------------------------------
    pieces = [zq, h]                                                  # latent | reconstruction
    if out_width > 2 * cmax:
        pieces.append(jnp.zeros((rows, out_width - 2 * cmax), jnp.float32))
    dense_ref[...] = jnp.concatenate(pieces, axis=1)

    spieces = [counts, sse]                                           # counts | SSE scalar
    if stat_width > n_codes + 1:
        spieces.append(jnp.zeros((1, stat_width - n_codes - 1), jnp.float32))
    stats_ref[...] = jnp.concatenate(spieces, axis=1)

    # trace-time consistency check between the static layer program and the weight stack
    assert layer_ctr[0] == w_ref.shape[0], "layer program / weight stack mismatch"


# ------------------------------------------------------------------------------------------------
# Host wrapper: one pallas_call for the whole forward, plus a few scalar XLA ops for loss/ppl.
# ------------------------------------------------------------------------------------------------
def make_vqvae_forward(args):
    n_layer = int(args.vae_layer)
    din = int(args.vae_test_dim)
    clat = int(args.vae_length)
    cmax = max(din, clat)
    n_codes = int(args.vae_codebook_size)
    beta = float(args.vae_quantizer_lambda)
    out_width = _round_up(2 * cmax, 128)          # latent || reconstruction, 128-lane dense
    stat_width = _round_up(n_codes + 1, 128)      # counts || SSE, 128-lane dense

    def forward(x, fp):
        B, T, _ = x.shape
        rows = B * T
        if cmax > din:
            x = jnp.pad(x, ((0, 0), (0, 0), (0, cmax - din)))         # single channel pad
        x2 = x.reshape(rows, cmax)                                    # batch folded into rows

        kernel = functools.partial(
            _fused_vqvae_kernel, batch=B, seq_len=T, cmax=cmax, n_layer=n_layer,
            n_codes=n_codes, out_width=out_width, stat_width=stat_width)

        # No grid: the whole problem (<1 MiB resident) runs in one invocation with every
        # operand placed in VMEM; there is nothing to pipeline across steps.
        dense, stats = pl.pallas_call(
            kernel,
            out_shape=(
                jax.ShapeDtypeStruct((rows, out_width), jnp.float32),   # [zq | rec | 0-pad]
                jax.ShapeDtypeStruct((1, stat_width), jnp.float32),     # [counts | SSE | 0-pad]
            ),
        )(x2, fp["w"], fp["b"], fp["cb"], fp["cb_sq"])

        dense = dense.reshape(B, T, out_width)
        vq = dense[:, :, :clat]                                        # quantized latent
        rec = dense[:, :, cmax:cmax + din]                             # reconstruction
        counts = stats[0, :n_codes]
        sse = stats[0, n_codes]

        n = B * T
        mse = sse / float(n * clat)                  # mean((z_q - z)^2) over true channels
        loss = (1.0 + beta) * mse                    # forward value of mse + beta * mse
        e_mean = counts / float(n)
        perplexity = jnp.exp(-jnp.sum(e_mean * jnp.log(e_mean + 1e-10)))
        return {
            "poses_feat": vq,
            "embedding_loss": loss,
            "perplexity": perplexity,
            "rec_pose": rec,
        }

    return forward


# ------------------------------------------------------------------------------------------------
# Parameter init (PyTorch-default-style uniform bounds) and one-time consolidation/padding.
# ------------------------------------------------------------------------------------------------
def _init_conv(key, cin, cout, k=3):
    kw, kb = jax.random.split(key)
    bound = 1.0 / math.sqrt(cin * k)
    w = jax.random.uniform(kw, (k, cin, cout), jnp.float32, -bound, bound)
    b = jax.random.uniform(kb, (1, cout), jnp.float32, -bound, bound)
    return {"w": w, "b": b}


def _init_resblock(key, c):
    k1, k2 = jax.random.split(key)
    return {"conv1": _init_conv(k1, c, c), "conv2": _init_conv(k2, c, c)}


def init_params(key, args):
    n_layer, d_in, d_lat = args.vae_layer, args.vae_test_dim, args.vae_length
    keys = jax.random.split(key, 64)
    ki = iter(range(64))

    # Encoder: n_layer x [Conv(cin->d_lat) + ResBlock(d_lat)]
    encoder = []
    cin = d_in
    for _ in range(n_layer):
        encoder.append({
            "conv": _init_conv(keys[next(ki)], cin, d_lat),
            "res": _init_resblock(keys[next(ki)], d_lat),
        })
        cin = d_lat

    # Decoder: 2 x ResBlock(d_lat), convs over [d_lat]*(n_layer-1)+[d_lat,d_in], final Conv(d_in)
    dec_channels = [d_lat] * (n_layer - 1) + [d_lat, d_in]
    decoder = {
        "resblocks": [_init_resblock(keys[next(ki)], d_lat) for _ in range(2)],
        "convs": [_init_conv(keys[next(ki)], dec_channels[i], dec_channels[i + 1])
                  for i in range(n_layer)],
        "final": _init_conv(keys[next(ki)], dec_channels[-1], dec_channels[-1]),
    }

    # Quantizer codebook: uniform(-1/n_e, 1/n_e) like nn.Embedding init in Quantizer.__init__
    codebook = jax.random.uniform(
        keys[next(ki)], (args.vae_codebook_size, d_lat), jnp.float32,
        -1.0 / args.vae_codebook_size, 1.0 / args.vae_codebook_size)

    return {"encoder": encoder, "decoder": decoder, "codebook": codebook}


def prepare_fused_params(params, args):
    """Pad every conv to (3*CMAX, CMAX)/(1, CMAX), stack in kernel layer order, cast W to bf16."""
    cmax = max(int(args.vae_test_dim), int(args.vae_length))

    def pad_conv(c):
        w, b = c["w"], c["b"]                                  # (3, cin, cout), (1, cout)
        _, cin, cout = w.shape
        wp = jnp.zeros((3, cmax, cmax), jnp.float32).at[:, :cin, :cout].set(w)
        wp = wp.reshape(3 * cmax, cmax)                        # tap k -> rows [k*cmax:(k+1)*cmax]
        bp = jnp.zeros((1, cmax), jnp.float32).at[:, :cout].set(b)
        return wp, bp

    convs = []
    for layer in params["encoder"]:
        convs += [layer["conv"], layer["res"]["conv1"], layer["res"]["conv2"]]
    dec = params["decoder"]
    for rp in dec["resblocks"]:
        convs += [rp["conv1"], rp["conv2"]]
    convs += list(dec["convs"])
    convs.append(dec["final"])

    padded = [pad_conv(c) for c in convs]
    w_all = jnp.stack([wp for wp, _ in padded], axis=0).astype(jnp.bfloat16)  # (L, 3*cmax, cmax)
    b_all = jnp.stack([bp for _, bp in padded], axis=0)                        # (L, 1, cmax) f32

    cb = params["codebook"]                                    # (K, clat)
    cb_pad = jnp.zeros((cb.shape[0], cmax), jnp.float32).at[:, :cb.shape[1]].set(cb)
    cb_sq = jnp.sum(cb_pad * cb_pad, axis=1)[None, :]          # (1, K), hoisted out of the kernel
    return {"w": w_all, "b": b_all, "cb": cb_pad, "cb_sq": cb_sq}


class Args:
    vae_test_dim = 16           # input pose feature dim
    vae_length = 32             # latent / codebook embedding dim
    vae_layer = 2               # number of encoder blocks / decoder conv blocks
    vae_codebook_size = 64      # number of codebook entries
    vae_quantizer_lambda = 1.0  # beta in Quantizer loss


if __name__ == "__main__":
    args = Args()
    key = jax.random.PRNGKey(0)
    k_in, k_par = jax.random.split(key)

    B, T = 2, 16
    inputs = jax.random.normal(k_in, (B, T, args.vae_test_dim), jnp.float32)  # (B, T, pose_dim)
    params = init_params(k_par, args)
    fused_params = prepare_fused_params(params, args)   # one-time consolidation (outside jit)

    forward = make_vqvae_forward(args)
    run = jax.jit(forward)
    out = run(inputs, fused_params)
    jax.block_until_ready(out)

    assert out["poses_feat"].shape == (B, T, args.vae_length)
    assert out["rec_pose"].shape == (B, T, args.vae_test_dim)
    assert out["embedding_loss"].shape == ()
    assert out["perplexity"].shape == ()
    assert bool(jnp.isfinite(out["rec_pose"]).all())
    assert bool(jnp.isfinite(out["poses_feat"]).all())
    assert bool(jnp.isfinite(out["embedding_loss"]))
    assert bool(jnp.isfinite(out["perplexity"]))
    print("KERNEL_OK")
</pallas_src>

<mosaic_0001>
module attributes {stable_mosaic.version = 11 : i64} {
  func.func @_fused_vqvae_kernel(%arg0: memref<32x32xf32, #tpu.memory_space<vmem>>, %arg1: memref<13x96x32xbf16, #tpu.memory_space<vmem>>, %arg2: memref<13x1x32xf32, #tpu.memory_space<vmem>>, %arg3: memref<64x32xf32, #tpu.memory_space<vmem>>, %arg4: memref<1x64xf32, #tpu.memory_space<vmem>>, %arg5: memref<32x128xf32, #tpu.memory_space<vmem>>, %arg6: memref<1x128xf32, #tpu.memory_space<vmem>>) attributes {dimension_semantics = [], scalar_prefetch = 0 : i64, scratch_operands = 0 : i64, tpu.core_type = #tpu.core_type<tc>} {
    %0 = tpu.iota {dimensions = array<i32: 0>} : vector<32x1xi32>
    %c16_i32 = arith.constant 16 : i32
    %c0_i32 = arith.constant 0 : i32
    %1 = arith.cmpi eq, %c16_i32, %c0_i32 : i32
    %c1_i32 = arith.constant 1 : i32
    %2 = arith.select %1, %c1_i32, %c16_i32 : i32
    %3 = vector.broadcast %2 : i32 to vector<32x1xi32>
    %4 = arith.remsi %0, %3 : vector<32x1xi32>
    %c0_i32_0 = arith.constant 0 : i32
    %5 = vector.broadcast %c0_i32_0 : i32 to vector<32x1xi32>
    %6 = arith.cmpi ne, %4, %5 : vector<32x1xi32>
    %c0_i32_1 = arith.constant 0 : i32
    %7 = vector.broadcast %c0_i32_1 : i32 to vector<32x1xi32>
    %8 = arith.cmpi slt, %4, %7 : vector<32x1xi32>
    %c0_i32_2 = arith.constant 0 : i32
    %9 = arith.cmpi slt, %2, %c0_i32_2 : i32
    %10 = vector.broadcast %9 : i1 to vector<32x1xi1>
    %11 = vector.broadcast %10 : vector<32x1xi1> to vector<32x1xi1>
    %12 = arith.xori %8, %11 : vector<32x1xi1>
    %13 = arith.andi %12, %6 : vector<32x1xi1>
    %14 = vector.broadcast %2 : i32 to vector<32x1xi32>
    %15 = arith.addi %4, %14 : vector<32x1xi32>
    %16 = arith.select %13, %15, %4 : vector<32x1xi1>, vector<32x1xi32>
    %c0_i32_3 = arith.constant 0 : i32
    %17 = vector.broadcast %c0_i32_3 : i32 to vector<32x1xi32>
    %18 = arith.cmpi ne, %16, %17 : vector<32x1xi32>
    %c15_i32 = arith.constant 15 : i32
    %19 = vector.broadcast %c15_i32 : i32 to vector<32x1xi32>
    %20 = arith.cmpi ne, %16, %19 : vector<32x1xi32>
    %c0 = arith.constant 0 : index
    %c0_4 = arith.constant 0 : index
    %21 = vector.load %arg0[%c0, %c0_4] : memref<32x32xf32, #tpu.memory_space<vmem>>, vector<32x32xf32>
    %22 = vector.extract_strided_slice %21 {offsets = [31, 0], sizes = [1, 32], strides = [1, 1]} : vector<32x32xf32> to vector<1x32xf32>
    %23 = vector.extract_strided_slice %21 {offsets = [0, 0], sizes = [31, 32], strides = [1, 1]} : vector<32x32xf32> to vector<31x32xf32>
    %24 = tpu.concatenate %22, %23 in 0 : vector<1x32xf32>, vector<31x32xf32> -> vector<32x32xf32>
    %cst = arith.constant 0.000000e+00 : f32
    %25 = vector.shape_cast %18 : vector<32x1xi1> to vector<32x1xi1>
    %26 = vector.broadcast %25 : vector<32x1xi1> to vector<32x32xi1>
    %27 = vector.broadcast %cst : f32 to vector<32x32xf32>
    %28 = arith.select %26, %24, %27 : vector<32x32xi1>, vector<32x32xf32>
    %29 = vector.extract_strided_slice %21 {offsets = [1, 0], sizes = [31, 32], strides = [1, 1]} : vector<32x32xf32> to vector<31x32xf32>
    %30 = vector.extract_strided_slice %21 {offsets = [0, 0], sizes = [1, 32], strides = [1, 1]} : vector<32x32xf32> to vector<1x32xf32>
    %31 = tpu.concatenate %29, %30 in 0 : vector<31x32xf32>, vector<1x32xf32> -> vector<32x32xf32>
    %cst_5 = arith.constant 0.000000e+00 : f32
    %32 = vector.shape_cast %20 : vector<32x1xi1> to vector<32x1xi1>
    %33 = vector.broadcast %32 : vector<32x1xi1> to vector<32x32xi1>
    %34 = vector.broadcast %cst_5 : f32 to vector<32x32xf32>
    %35 = arith.select %33, %31, %34 : vector<32x32xi1>, vector<32x32xf32>
    %36 = tpu.concatenate %28, %21, %35 in 1 : vector<32x32xf32>, vector<32x32xf32>, vector<32x32xf32> -> vector<32x96xf32>
    %37 = arith.truncf %36 : vector<32x96xf32> to vector<32x96xbf16>
    %c0_6 = arith.constant 0 : index
    %c0_7 = arith.constant 0 : index
    %c0_8 = arith.constant 0 : index
    %38 = vector.load %arg1[%c0_6, %c0_7, %c0_8] : memref<13x96x32xbf16, #tpu.memory_space<vmem>>, vector<1x96x32xbf16>
    %39 = vector.shape_cast %38 : vector<1x96x32xbf16> to vector<96x32xbf16>
    %cst_9 = arith.constant dense<0.000000e+00> : vector<32x32xf32>
    %40 = tpu.matmul %37, %39, %cst_9 {dimension_numbers = #tpu.dot_dimension_numbers<[1], [0], [0], [1], [0, 0, 1, 1], [], []>} : vector<32x96xbf16>, vector<96x32xbf16>, vector<32x32xf32> -> vector<32x32xf32>
    %c0_10 = arith.constant 0 : index
    %c0_11 = arith.constant 0 : index
    %c0_12 = arith.constant 0 : index
    %41 = vector.load %arg2[%c0_10, %c0_11, %c0_12] : memref<13x1x32xf32, #tpu.memory_space<vmem>>, vector<1x1x32xf32>
    %42 = vector.shape_cast %41 : vector<1x1x32xf32> to vector<1x32xf32>
    %43 = vector.broadcast %42 : vector<1x32xf32> to vector<32x32xf32>
    %44 = arith.addf %40, %43 : vector<32x32xf32>
    %cst_13 = arith.constant 0.000000e+00 : f32
    %45 = vector.broadcast %cst_13 : f32 to vector<32x32xf32>
    %46 = arith.cmpf oge, %44, %45 : vector<32x32xf32>
    %cst_14 = arith.constant 2.000000e-01 : f32
    %47 = vector.broadcast %cst_14 : f32 to vector<32x32xf32>
    %48 = arith.mulf %47, %44 : vector<32x32xf32>
    %49 = arith.select %46, %44, %48 : vector<32x32xi1>, vector<32x32xf32>
    %50 = vector.extract_strided_slice %49 {offsets = [31, 0], sizes = [1, 32], strides = [1, 1]} : vector<32x32xf32> to vector<1x32xf32>
    %51 = vector.extract_strided_slice %49 {offsets = [0, 0], sizes = [31, 32], strides = [1, 1]} : vector<32x32xf32> to vector<31x32xf32>
    %52 = tpu.concatenate %50, %51 in 0 : vector<1x32xf32>, vector<31x32xf32> -> vector<32x32xf32>
    %cst_15 = arith.constant 0.000000e+00 : f32
    %53 = vector.shape_cast %18 : vector<32x1xi1> to vector<32x1xi1>
    %54 = vector.broadcast %53 : vector<32x1xi1> to vector<32x32xi1>
    %55 = vector.broadcast %cst_15 : f32 to vector<32x32xf32>
    %56 = arith.select %54, %52, %55 : vector<32x32xi1>, vector<32x32xf32>
    %57 = vector.extract_strided_slice %49 {offsets = [1, 0], sizes = [31, 32], strides = [1, 1]} : vector<32x32xf32> to vector<31x32xf32>
    %58 = vector.extract_strided_slice %49 {offsets = [0, 0], sizes = [1, 32], strides = [1, 1]} : vector<32x32xf32> to vector<1x32xf32>
    %59 = tpu.concatenate %57, %58 in 0 : vector<31x32xf32>, vector<1x32xf32> -> vector<32x32xf32>
    %cst_16 = arith.constant 0.000000e+00 : f32
    %60 = vector.shape_cast %20 : vector<32x1xi1> to vector<32x1xi1>
    %61 = vector.broadcast %60 : vector<32x1xi1> to vector<32x32xi1>
    %62 = vector.broadcast %cst_16 : f32 to vector<32x32xf32>
    %63 = arith.select %61, %59, %62 : vector<32x32xi1>, vector<32x32xf32>
    %64 = tpu.concatenate %56, %49, %63 in 1 : vector<32x32xf32>, vector<32x32xf32>, vector<32x32xf32> -> vector<32x96xf32>
    %65 = arith.truncf %64 : vector<32x96xf32> to vector<32x96xbf16>
    %c1 = arith.constant 1 : index
    %c0_17 = arith.constant 0 : index
    %c0_18 = arith.constant 0 : index
    %66 = vector.load %arg1[%c1, %c0_17, %c0_18] : memref<13x96x32xbf16, #tpu.memory_space<vmem>>, vector<1x96x32xbf16>
    %67 = vector.shape_cast %66 : vector<1x96x32xbf16> to vector<96x32xbf16>
    %cst_19 = arith.constant dense<0.000000e+00> : vector<32x32xf32>
    %68 = tpu.matmul %65, %67, %cst_19 {dimension_numbers = #tpu.dot_dimension_numbers<[1], [0], [0], [1], [0, 0, 1, 1], [], []>} : vector<32x96xbf16>, vector<96x32xbf16>, vector<32x32xf32> -> vector<32x32xf32>
    %c1_20 = arith.constant 1 : index
    %c0_21 = arith.constant 0 : index
    %c0_22 = arith.constant 0 : index
    %69 = vector.load %arg2[%c1_20, %c0_21, %c0_22] : memref<13x1x32xf32, #tpu.memory_space<vmem>>, vector<1x1x32xf32>
    %70 = vector.shape_cast %69 : vector<1x1x32xf32> to vector<1x32xf32>
    %71 = vector.broadcast %70 : vector<1x32xf32> to vector<32x32xf32>
    %72 = arith.addf %68, %71 : vector<32x32xf32>
    %cst_23 = arith.constant 0.000000e+00 : f32
    %73 = vector.broadcast %cst_23 : f32 to vector<32x32xf32>
    %74 = arith.cmpf oge, %72, %73 : vector<32x32xf32>
    %cst_24 = arith.constant 2.000000e-01 : f32
    %75 = vector.broadcast %cst_24 : f32 to vector<32x32xf32>
    %76 = arith.mulf %75, %72 : vector<32x32xf32>
    %77 = arith.select %74, %72, %76 : vector<32x32xi1>, vector<32x32xf32>
    %78 = vector.extract_strided_slice %77 {offsets = [31, 0], sizes = [1, 32], strides = [1, 1]} : vector<32x32xf32> to vector<1x32xf32>
    %79 = vector.extract_strided_slice %77 {offsets = [0, 0], sizes = [31, 32], strides = [1, 1]} : vector<32x32xf32> to vector<31x32xf32>
    %80 = tpu.concatenate %78, %79 in 0 : vector<1x32xf32>, vector<31x32xf32> -> vector<32x32xf32>
    %cst_25 = arith.constant 0.000000e+00 : f32
    %81 = vector.shape_cast %18 : vector<32x1xi1> to vector<32x1xi1>
    %82 = vector.broadcast %81 : vector<32x1xi1> to vector<32x32xi1>
    %83 = vector.broadcast %cst_25 : f32 to vector<32x32xf32>
    %84 = arith.select %82, %80, %83 : vector<32x32xi1>, vector<32x32xf32>
    %85 = vector.extract_strided_slice %77 {offsets = [1, 0], sizes = [31, 32], strides = [1, 1]} : vector<32x32xf32> to vector<31x32xf32>
    %86 = vector.extract_strided_slice %77 {offsets = [0, 0], sizes = [1, 32], strides = [1, 1]} : vector<32x32xf32> to vector<1x32xf32>
    %87 = tpu.concatenate %85, %86 in 0 : vector<31x32xf32>, vector<1x32xf32> -> vector<32x32xf32>
    %cst_26 = arith.constant 0.000000e+00 : f32
    %88 = vector.shape_cast %20 : vector<32x1xi1> to vector<32x1xi1>
    %89 = vector.broadcast %88 : vector<32x1xi1> to vector<32x32xi1>
    %90 = vector.broadcast %cst_26 : f32 to vector<32x32xf32>
    %91 = arith.select %89, %87, %90 : vector<32x32xi1>, vector<32x32xf32>
    %92 = tpu.concatenate %84, %77, %91 in 1 : vector<32x32xf32>, vector<32x32xf32>, vector<32x32xf32> -> vector<32x96xf32>
    %93 = arith.truncf %92 : vector<32x96xf32> to vector<32x96xbf16>
    %c2 = arith.constant 2 : index
    %c0_27 = arith.constant 0 : index
    %c0_28 = arith.constant 0 : index
    %94 = vector.load %arg1[%c2, %c0_27, %c0_28] : memref<13x96x32xbf16, #tpu.memory_space<vmem>>, vector<1x96x32xbf16>
    %95 = vector.shape_cast %94 : vector<1x96x32xbf16> to vector<96x32xbf16>
    %cst_29 = arith.constant dense<0.000000e+00> : vector<32x32xf32>
    %96 = tpu.matmul %93, %95, %cst_29 {dimension_numbers = #tpu.dot_dimension_numbers<[1], [0], [0], [1], [0, 0, 1, 1], [], []>} : vector<32x96xbf16>, vector<96x32xbf16>, vector<32x32xf32> -> vector<32x32xf32>
    %c2_30 = arith.constant 2 : index
    %c0_31 = arith.constant 0 : index
    %c0_32 = arith.constant 0 : index
    %97 = vector.load %arg2[%c2_30, %c0_31, %c0_32] : memref<13x1x32xf32, #tpu.memory_space<vmem>>, vector<1x1x32xf32>
    %98 = vector.shape_cast %97 : vector<1x1x32xf32> to vector<1x32xf32>
    %99 = vector.broadcast %98 : vector<1x32xf32> to vector<32x32xf32>
    %100 = arith.addf %96, %99 : vector<32x32xf32>
    %101 = arith.addf %100, %49 : vector<32x32xf32>
    %102 = vector.extract_strided_slice %101 {offsets = [31, 0], sizes = [1, 32], strides = [1, 1]} : vector<32x32xf32> to vector<1x32xf32>
    %103 = vector.extract_strided_slice %101 {offsets = [0, 0], sizes = [31, 32], strides = [1, 1]} : vector<32x32xf32> to vector<31x32xf32>
    %104 = tpu.concatenate %102, %103 in 0 : vector<1x32xf32>, vector<31x32xf32> -> vector<32x32xf32>
    %cst_33 = arith.constant 0.000000e+00 : f32
    %105 = vector.shape_cast %18 : vector<32x1xi1> to vector<32x1xi1>
    %106 = vector.broadcast %105 : vector<32x1xi1> to vector<32x32xi1>
    %107 = vector.broadcast %cst_33 : f32 to vector<32x32xf32>
    %108 = arith.select %106, %104, %107 : vector<32x32xi1>, vector<32x32xf32>
    %109 = vector.extract_strided_slice %101 {offsets = [1, 0], sizes = [31, 32], strides = [1, 1]} : vector<32x32xf32> to vector<31x32xf32>
    %110 = vector.extract_strided_slice %101 {offsets = [0, 0], sizes = [1, 32], strides = [1, 1]} : vector<32x32xf32> to vector<1x32xf32>
    %111 = tpu.concatenate %109, %110 in 0 : vector<31x32xf32>, vector<1x32xf32> -> vector<32x32xf32>
    %cst_34 = arith.constant 0.000000e+00 : f32
    %112 = vector.shape_cast %20 : vector<32x1xi1> to vector<32x1xi1>
    %113 = vector.broadcast %112 : vector<32x1xi1> to vector<32x32xi1>
    %114 = vector.broadcast %cst_34 : f32 to vector<32x32xf32>
    %115 = arith.select %113, %111, %114 : vector<32x32xi1>, vector<32x32xf32>
    %116 = tpu.concatenate %108, %101, %115 in 1 : vector<32x32xf32>, vector<32x32xf32>, vector<32x32xf32> -> vector<32x96xf32>
    %117 = arith.truncf %116 : vector<32x96xf32> to vector<32x96xbf16>
    %c3 = arith.constant 3 : index
    %c0_35 = arith.constant 0 : index
    %c0_36 = arith.constant 0 : index
    %118 = vector.load %arg1[%c3, %c0_35, %c0_36] : memref<13x96x32xbf16, #tpu.memory_space<vmem>>, vector<1x96x32xbf16>
    %119 = vector.shape_cast %118 : vector<1x96x32xbf16> to vector<96x32xbf16>
    %cst_37 = arith.constant dense<0.000000e+00> : vector<32x32xf32>
    %120 = tpu.matmul %117, %119, %cst_37 {dimension_numbers = #tpu.dot_dimension_numbers<[1], [0], [0], [1], [0, 0, 1, 1], [], []>} : vector<32x96xbf16>, vector<96x32xbf16>, vector<32x32xf32> -> vector<32x32xf32>
    %c3_38 = arith.constant 3 : index
    %c0_39 = arith.constant 0 : index
    %c0_40 = arith.constant 0 : index
    %121 = vector.load %arg2[%c3_38, %c0_39, %c0_40] : memref<13x1x32xf32, #tpu.memory_space<vmem>>, vector<1x1x32xf32>
    %122 = vector.shape_cast %121 : vector<1x1x32xf32> to vector<1x32xf32>
    %123 = vector.broadcast %122 : vector<1x32xf32> to vector<32x32xf32>
    %124 = arith.addf %120, %123 : vector<32x32xf32>
    %cst_41 = arith.constant 0.000000e+00 : f32
    %125 = vector.broadcast %cst_41 : f32 to vector<32x32xf32>
    %126 = arith.cmpf oge, %124, %125 : vector<32x32xf32>
    %cst_42 = arith.constant 2.000000e-01 : f32
    %127 = vector.broadcast %cst_42 : f32 to vector<32x32xf32>
    %128 = arith.mulf %127, %124 : vector<32x32xf32>
    %129 = arith.select %126, %124, %128 : vector<32x32xi1>, vector<32x32xf32>
    %130 = vector.extract_strided_slice %129 {offsets = [31, 0], sizes = [1, 32], strides = [1, 1]} : vector<32x32xf32> to vector<1x32xf32>
    %131 = vector.extract_strided_slice %129 {offsets = [0, 0], sizes = [31, 32], strides = [1, 1]} : vector<32x32xf32> to vector<31x32xf32>
    %132 = tpu.concatenate %130, %131 in 0 : vector<1x32xf32>, vector<31x32xf32> -> vector<32x32xf32>
    %cst_43 = arith.constant 0.000000e+00 : f32
    %133 = vector.shape_cast %18 : vector<32x1xi1> to vector<32x1xi1>
    %134 = vector.broadcast %133 : vector<32x1xi1> to vector<32x32xi1>
    %135 = vector.broadcast %cst_43 : f32 to vector<32x32xf32>
    %136 = arith.select %134, %132, %135 : vector<32x32xi1>, vector<32x32xf32>
    %137 = vector.extract_strided_slice %129 {offsets = [1, 0], sizes = [31, 32], strides = [1, 1]} : vector<32x32xf32> to vector<31x32xf32>
    %138 = vector.extract_strided_slice %129 {offsets = [0, 0], sizes = [1, 32], strides = [1, 1]} : vector<32x32xf32> to vector<1x32xf32>
    %139 = tpu.concatenate %137, %138 in 0 : vector<31x32xf32>, vector<1x32xf32> -> vector<32x32xf32>
    %cst_44 = arith.constant 0.000000e+00 : f32
    %140 = vector.shape_cast %20 : vector<32x1xi1> to vector<32x1xi1>
    %141 = vector.broadcast %140 : vector<32x1xi1> to vector<32x32xi1>
    %142 = vector.broadcast %cst_44 : f32 to vector<32x32xf32>
    %143 = arith.select %141, %139, %142 : vector<32x32xi1>, vector<32x32xf32>
    %144 = tpu.concatenate %136, %129, %143 in 1 : vector<32x32xf32>, vector<32x32xf32>, vector<32x32xf32> -> vector<32x96xf32>
    %145 = arith.truncf %144 : vector<32x96xf32> to vector<32x96xbf16>
    %c4 = arith.constant 4 : index
    %c0_45 = arith.constant 0 : index
    %c0_46 = arith.constant 0 : index
    %146 = vector.load %arg1[%c4, %c0_45, %c0_46] : memref<13x96x32xbf16, #tpu.memory_space<vmem>>, vector<1x96x32xbf16>
    %147 = vector.shape_cast %146 : vector<1x96x32xbf16> to vector<96x32xbf16>
    %cst_47 = arith.constant dense<0.000000e+00> : vector<32x32xf32>
    %148 = tpu.matmul %145, %147, %cst_47 {dimension_numbers = #tpu.dot_dimension_numbers<[1], [0], [0], [1], [0, 0, 1, 1], [], []>} : vector<32x96xbf16>, vector<96x32xbf16>, vector<32x32xf32> -> vector<32x32xf32>
    %c4_48 = arith.constant 4 : index
    %c0_49 = arith.constant 0 : index
    %c0_50 = arith.constant 0 : index
    %149 = vector.load %arg2[%c4_48, %c0_49, %c0_50] : memref<13x1x32xf32, #tpu.memory_space<vmem>>, vector<1x1x32xf32>
    %150 = vector.shape_cast %149 : vector<1x1x32xf32> to vector<1x32xf32>
    %151 = vector.broadcast %150 : vector<1x32xf32> to vector<32x32xf32>
    %152 = arith.addf %148, %151 : vector<32x32xf32>
    %cst_51 = arith.constant 0.000000e+00 : f32
    %153 = vector.broadcast %cst_51 : f32 to vector<32x32xf32>
    %154 = arith.cmpf oge, %152, %153 : vector<32x32xf32>
    %cst_52 = arith.constant 2.000000e-01 : f32
    %155 = vector.broadcast %cst_52 : f32 to vector<32x32xf32>
    %156 = arith.mulf %155, %152 : vector<32x32xf32>
    %157 = arith.select %154, %152, %156 : vector<32x32xi1>, vector<32x32xf32>
    %158 = vector.extract_strided_slice %157 {offsets = [31, 0], sizes = [1, 32], strides = [1, 1]} : vector<32x32xf32> to vector<1x32xf32>
    %159 = vector.extract_strided_slice %157 {offsets = [0, 0], sizes = [31, 32], strides = [1, 1]} : vector<32x32xf32> to vector<31x32xf32>
    %160 = tpu.concatenate %158, %159 in 0 : vector<1x32xf32>, vector<31x32xf32> -> vector<32x32xf32>
    %cst_53 = arith.constant 0.000000e+00 : f32
    %161 = vector.shape_cast %18 : vector<32x1xi1> to vector<32x1xi1>
    %162 = vector.broadcast %161 : vector<32x1xi1> to vector<32x32xi1>
    %163 = vector.broadcast %cst_53 : f32 to vector<32x32xf32>
    %164 = arith.select %162, %160, %163 : vector<32x32xi1>, vector<32x32xf32>
    %165 = vector.extract_strided_slice %157 {offsets = [1, 0], sizes = [31, 32], strides = [1, 1]} : vector<32x32xf32> to vector<31x32xf32>
    %166 = vector.extract_strided_slice %157 {offsets = [0, 0], sizes = [1, 32], strides = [1, 1]} : vector<32x32xf32> to vector<1x32xf32>
    %167 = tpu.concatenate %165, %166 in 0 : vector<31x32xf32>, vector<1x32xf32> -> vector<32x32xf32>
    %cst_54 = arith.constant 0.000000e+00 : f32
    %168 = vector.shape_cast %20 : vector<32x1xi1> to vector<32x1xi1>
    %169 = vector.broadcast %168 : vector<32x1xi1> to vector<32x32xi1>
    %170 = vector.broadcast %cst_54 : f32 to vector<32x32xf32>
    %171 = arith.select %169, %167, %170 : vector<32x32xi1>, vector<32x32xf32>
    %172 = tpu.concatenate %164, %157, %171 in 1 : vector<32x32xf32>, vector<32x32xf32>, vector<32x32xf32> -> vector<32x96xf32>
    %173 = arith.truncf %172 : vector<32x96xf32> to vector<32x96xbf16>
    %c5 = arith.constant 5 : index
    %c0_55 = arith.constant 0 : index
    %c0_56 = arith.constant 0 : index
    %174 = vector.load %arg1[%c5, %c0_55, %c0_56] : memref<13x96x32xbf16, #tpu.memory_space<vmem>>, vector<1x96x32xbf16>
    %175 = vector.shape_cast %174 : vector<1x96x32xbf16> to vector<96x32xbf16>
    %cst_57 = arith.constant dense<0.000000e+00> : vector<32x32xf32>
    %176 = tpu.matmul %173, %175, %cst_57 {dimension_numbers = #tpu.dot_dimension_numbers<[1], [0], [0], [1], [0, 0, 1, 1], [], []>} : vector<32x96xbf16>, vector<96x32xbf16>, vector<32x32xf32> -> vector<32x32xf32>
    %c5_58 = arith.constant 5 : index
    %c0_59 = arith.constant 0 : index
    %c0_60 = arith.constant 0 : index
    %177 = vector.load %arg2[%c5_58, %c0_59, %c0_60] : memref<13x1x32xf32, #tpu.memory_space<vmem>>, vector<1x1x32xf32>
    %178 = vector.shape_cast %177 : vector<1x1x32xf32> to vector<1x32xf32>
    %179 = vector.broadcast %178 : vector<1x32xf32> to vector<32x32xf32>
    %180 = arith.addf %176, %179 : vector<32x32xf32>
    %181 = arith.addf %180, %129 : vector<32x32xf32>
    %c0_61 = arith.constant 0 : index
    %c0_62 = arith.constant 0 : index
    %182 = vector.load %arg3[%c0_61, %c0_62] : memref<64x32xf32, #tpu.memory_space<vmem>>, vector<64x32xf32>
    %183 = arith.mulf %181, %181 : vector<32x32xf32>
    %cst_63 = arith.constant dense<0.000000e+00> : vector<32xf32>
    %184 = vector.multi_reduction <add>, %183, %cst_63 [1] : vector<32x32xf32> to vector<32xf32>
    %185 = vector.shape_cast %184 : vector<32xf32> to vector<32x1xf32>
    %c0_64 = arith.constant 0 : index
    %c0_65 = arith.constant 0 : index
    %186 = vector.load %arg4[%c0_64, %c0_65] : memref<1x64xf32, #tpu.memory_space<vmem>>, vector<1x64xf32>
    %187 = arith.truncf %181 : vector<32x32xf32> to vector<32x32xbf16>
    %188 = arith.truncf %182 : vector<64x32xf32> to vector<64x32xbf16>
    %cst_66 = arith.constant dense<0.000000e+00> : vector<32x64xf32>
    %189 = tpu.matmul %187, %188, %cst_66 {dimension_numbers = #tpu.dot_dimension_numbers<[1], [1], [0], [0], [0, 0, 1, 0], [], []>} : vector<32x32xbf16>, vector<64x32xbf16>, vector<32x64xf32> -> vector<32x64xf32>
    %190 = vector.broadcast %185 : vector<32x1xf32> to vector<32x64xf32>
    %191 = vector.broadcast %186 : vector<1x64xf32> to vector<32x64xf32>
    %192 = arith.addf %190, %191 : vector<32x64xf32>
    %cst_67 = arith.constant 2.000000e+00 : f32
    %193 = vector.broadcast %cst_67 : f32 to vector<32x64xf32>
    %194 = arith.mulf %193, %189 : vector<32x64xf32>
    %195 = arith.subf %192, %194 : vector<32x64xf32>
    %cst_68 = arith.constant dense<0x7F800000> : vector<32xf32>
    %196 = vector.multi_reduction <minimumf>, %195, %cst_68 [1] : vector<32x64xf32> to vector<32xf32>
    %197 = vector.shape_cast %196 : vector<32xf32> to vector<32x1xf32>
    %198 = tpu.iota {dimensions = array<i32: 1>} : vector<32x64xi32>
    %199 = vector.broadcast %197 : vector<32x1xf32> to vector<32x64xf32>
    %200 = arith.cmpf ole, %195, %199 : vector<32x64xf32>
    %c64_i32 = arith.constant 64 : i32
    %201 = vector.broadcast %c64_i32 : i32 to vector<32x64xi32>
    %202 = arith.select %200, %198, %201 : vector<32x64xi1>, vector<32x64xi32>
    %cst_69 = arith.constant dense<2147483647> : vector<32xi32>
    %203 = vector.multi_reduction <minsi>, %202, %cst_69 [1] : vector<32x64xi32> to vector<32xi32>
    %204 = vector.shape_cast %203 : vector<32xi32> to vector<32x1xi32>
    %205 = vector.broadcast %204 : vector<32x1xi32> to vector<32x64xi32>
    %206 = arith.cmpi eq, %198, %205 : vector<32x64xi32>
    %207 = arith.extui %206 : vector<32x64xi1> to vector<32x64xi32>
    %208 = arith.sitofp %207 : vector<32x64xi32> to vector<32x64xf32>
    %cst_70 = arith.constant dense<0.000000e+00> : vector<32x32xf32>
    %209 = tpu.matmul %208, %182, %cst_70 {dimension_numbers = #tpu.dot_dimension_numbers<[1], [0], [0], [1], [0, 0, 1, 1], [], []>} : vector<32x64xf32>, vector<64x32xf32>, vector<32x32xf32> -> vector<32x32xf32>
    %210 = arith.subf %209, %181 : vector<32x32xf32>
    %211 = arith.mulf %210, %210 : vector<32x32xf32>
    %cst_71 = arith.constant dense<0.000000e+00> : vector<32xf32>
    %212 = vector.multi_reduction <add>, %211, %cst_71 [1] : vector<32x32xf32> to vector<32xf32>
    %213 = vector.shape_cast %212 : vector<32xf32> to vector<32x1xf32>
    %cst_72 = arith.constant dense<0.000000e+00> : vector<1xf32>
    %214 = vector.multi_reduction <add>, %213, %cst_72 [0] : vector<32x1xf32> to vector<1xf32>
    %215 = vector.shape_cast %214 : vector<1xf32> to vector<1x1xf32>
    %cst_73 = arith.constant dense<0.000000e+00> : vector<64xf32>
    %216 = vector.multi_reduction <add>, %208, %cst_73 [0] : vector<32x64xf32> to vector<64xf32>
    %217 = vector.shape_cast %216 : vector<64xf32> to vector<1x64xf32>
    %218 = vector.extract_strided_slice %209 {offsets = [31, 0], sizes = [1, 32], strides = [1, 1]} : vector<32x32xf32> to vector<1x32xf32>
    %219 = vector.extract_strided_slice %209 {offsets = [0, 0], sizes = [31, 32], strides = [1, 1]} : vector<32x32xf32> to vector<31x32xf32>
    %220 = tpu.concatenate %218, %219 in 0 : vector<1x32xf32>, vector<31x32xf32> -> vector<32x32xf32>
    %cst_74 = arith.constant 0.000000e+00 : f32
    %221 = vector.shape_cast %18 : vector<32x1xi1> to vector<32x1xi1>
    %222 = vector.broadcast %221 : vector<32x1xi1> to vector<32x32xi1>
    %223 = vector.broadcast %cst_74 : f32 to vector<32x32xf32>
    %224 = arith.select %222, %220, %223 : vector<32x32xi1>, vector<32x32xf32>
    %225 = vector.extract_strided_slice %209 {offsets = [1, 0], sizes = [31, 32], strides = [1, 1]} : vector<32x32xf32> to vector<31x32xf32>
    %226 = vector.extract_strided_slice %209 {offsets = [0, 0], sizes = [1, 32], strides = [1, 1]} : vector<32x32xf32> to vector<1x32xf32>
    %227 = tpu.concatenate %225, %226 in 0 : vector<31x32xf32>, vector<1x32xf32> -> vector<32x32xf32>
    %cst_75 = arith.constant 0.000000e+00 : f32
    %228 = vector.shape_cast %20 : vector<32x1xi1> to vector<32x1xi1>
    %229 = vector.broadcast %228 : vector<32x1xi1> to vector<32x32xi1>
    %230 = vector.broadcast %cst_75 : f32 to vector<32x32xf32>
    %231 = arith.select %229, %227, %230 : vector<32x32xi1>, vector<32x32xf32>
    %232 = tpu.concatenate %224, %209, %231 in 1 : vector<32x32xf32>, vector<32x32xf32>, vector<32x32xf32> -> vector<32x96xf32>
    %233 = arith.truncf %232 : vector<32x96xf32> to vector<32x96xbf16>
    %c6 = arith.constant 6 : index
    %c0_76 = arith.constant 0 : index
    %c0_77 = arith.constant 0 : index
    %234 = vector.load %arg1[%c6, %c0_76, %c0_77] : memref<13x96x32xbf16, #tpu.memory_space<vmem>>, vector<1x96x32xbf16>
    %235 = vector.shape_cast %234 : vector<1x96x32xbf16> to vector<96x32xbf16>
    %cst_78 = arith.constant dense<0.000000e+00> : vector<32x32xf32>
    %236 = tpu.matmul %233, %235, %cst_78 {dimension_numbers = #tpu.dot_dimension_numbers<[1], [0], [0], [1], [0, 0, 1, 1], [], []>} : vector<32x96xbf16>, vector<96x32xbf16>, vector<32x32xf32> -> vector<32x32xf32>
    %c6_79 = arith.constant 6 : index
    %c0_80 = arith.constant 0 : index
    %c0_81 = arith.constant 0 : index
    %237 = vector.load %arg2[%c6_79, %c0_80, %c0_81] : memref<13x1x32xf32, #tpu.memory_space<vmem>>, vector<1x1x32xf32>
    %238 = vector.shape_cast %237 : vector<1x1x32xf32> to vector<1x32xf32>
    %239 = vector.broadcast %238 : vector<1x32xf32> to vector<32x32xf32>
    %240 = arith.addf %236, %239 : vector<32x32xf32>
    %cst_82 = arith.constant 0.000000e+00 : f32
    %241 = vector.broadcast %cst_82 : f32 to vector<32x32xf32>
    %242 = arith.cmpf oge, %240, %241 : vector<32x32xf32>
    %cst_83 = arith.constant 2.000000e-01 : f32
    %243 = vector.broadcast %cst_83 : f32 to vector<32x32xf32>
    %244 = arith.mulf %243, %240 : vector<32x32xf32>
    %245 = arith.select %242, %240, %244 : vector<32x32xi1>, vector<32x32xf32>
    %246 = vector.extract_strided_slice %245 {offsets = [31, 0], sizes = [1, 32], strides = [1, 1]} : vector<32x32xf32> to vector<1x32xf32>
    %247 = vector.extract_strided_slice %245 {offsets = [0, 0], sizes = [31, 32], strides = [1, 1]} : vector<32x32xf32> to vector<31x32xf32>
    %248 = tpu.concatenate %246, %247 in 0 : vector<1x32xf32>, vector<31x32xf32> -> vector<32x32xf32>
    %cst_84 = arith.constant 0.000000e+00 : f32
    %249 = vector.shape_cast %18 : vector<32x1xi1> to vector<32x1xi1>
    %250 = vector.broadcast %249 : vector<32x1xi1> to vector<32x32xi1>
    %251 = vector.broadcast %cst_84 : f32 to vector<32x32xf32>
    %252 = arith.select %250, %248, %251 : vector<32x32xi1>, vector<32x32xf32>
    %253 = vector.extract_strided_slice %245 {offsets = [1, 0], sizes = [31, 32], strides = [1, 1]} : vector<32x32xf32> to vector<31x32xf32>
    %254 = vector.extract_strided_slice %245 {offsets = [0, 0], sizes = [1, 32], strides = [1, 1]} : vector<32x32xf32> to vector<1x32xf32>
    %255 = tpu.concatenate %253, %254 in 0 : vector<31x32xf32>, vector<1x32xf32> -> vector<32x32xf32>
    %cst_85 = arith.constant 0.000000e+00 : f32
    %256 = vector.shape_cast %20 : vector<32x1xi1> to vector<32x1xi1>
    %257 = vector.broadcast %256 : vector<32x1xi1> to vector<32x32xi1>
    %258 = vector.broadcast %cst_85 : f32 to vector<32x32xf32>
    %259 = arith.select %257, %255, %258 : vector<32x32xi1>, vector<32x32xf32>
    %260 = tpu.concatenate %252, %245, %259 in 1 : vector<32x32xf32>, vector<32x32xf32>, vector<32x32xf32> -> vector<32x96xf32>
    %261 = arith.truncf %260 : vector<32x96xf32> to vector<32x96xbf16>
    %c7 = arith.constant 7 : index
    %c0_86 = arith.constant 0 : index
    %c0_87 = arith.constant 0 : index
    %262 = vector.load %arg1[%c7, %c0_86, %c0_87] : memref<13x96x32xbf16, #tpu.memory_space<vmem>>, vector<1x96x32xbf16>
    %263 = vector.shape_cast %262 : vector<1x96x32xbf16> to vector<96x32xbf16>
    %cst_88 = arith.constant dense<0.000000e+00> : vector<32x32xf32>
    %264 = tpu.matmul %261, %263, %cst_88 {dimension_numbers = #tpu.dot_dimension_numbers<[1], [0], [0], [1], [0, 0, 1, 1], [], []>} : vector<32x96xbf16>, vector<96x32xbf16>, vector<32x32xf32> -> vector<32x32xf32>
    %c7_89 = arith.constant 7 : index
    %c0_90 = arith.constant 0 : index
    %c0_91 = arith.constant 0 : index
    %265 = vector.load %arg2[%c7_89, %c0_90, %c0_91] : memref<13x1x32xf32, #tpu.memory_space<vmem>>, vector<1x1x32xf32>
    %266 = vector.shape_cast %265 : vector<1x1x32xf32> to vector<1x32xf32>
    %267 = vector.broadcast %266 : vector<1x32xf32> to vector<32x32xf32>
    %268 = arith.addf %264, %267 : vector<32x32xf32>
    %269 = arith.addf %268, %209 : vector<32x32xf32>
    %270 = vector.extract_strided_slice %269 {offsets = [31, 0], sizes = [1, 32], strides = [1, 1]} : vector<32x32xf32> to vector<1x32xf32>
    %271 = vector.extract_strided_slice %269 {offsets = [0, 0], sizes = [31, 32], strides = [1, 1]} : vector<32x32xf32> to vector<31x32xf32>
    %272 = tpu.concatenate %270, %271 in 0 : vector<1x32xf32>, vector<31x32xf32> -> vector<32x32xf32>
    %cst_92 = arith.constant 0.000000e+00 : f32
    %273 = vector.shape_cast %18 : vector<32x1xi1> to vector<32x1xi1>
    %274 = vector.broadcast %273 : vector<32x1xi1> to vector<32x32xi1>
    %275 = vector.broadcast %cst_92 : f32 to vector<32x32xf32>
    %276 = arith.select %274, %272, %275 : vector<32x32xi1>, vector<32x32xf32>
    %277 = vector.extract_strided_slice %269 {offsets = [1, 0], sizes = [31, 32], strides = [1, 1]} : vector<32x32xf32> to vector<31x32xf32>
    %278 = vector.extract_strided_slice %269 {offsets = [0, 0], sizes = [1, 32], strides = [1, 1]} : vector<32x32xf32> to vector<1x32xf32>
    %279 = tpu.concatenate %277, %278 in 0 : vector<31x32xf32>, vector<1x32xf32> -> vector<32x32xf32>
    %cst_93 = arith.constant 0.000000e+00 : f32
    %280 = vector.shape_cast %20 : vector<32x1xi1> to vector<32x1xi1>
    %281 = vector.broadcast %280 : vector<32x1xi1> to vector<32x32xi1>
    %282 = vector.broadcast %cst_93 : f32 to vector<32x32xf32>
    %283 = arith.select %281, %279, %282 : vector<32x32xi1>, vector<32x32xf32>
    %284 = tpu.concatenate %276, %269, %283 in 1 : vector<32x32xf32>, vector<32x32xf32>, vector<32x32xf32> -> vector<32x96xf32>
    %285 = arith.truncf %284 : vector<32x96xf32> to vector<32x96xbf16>
    %c8 = arith.constant 8 : index
    %c0_94 = arith.constant 0 : index
    %c0_95 = arith.constant 0 : index
    %286 = vector.load %arg1[%c8, %c0_94, %c0_95] : memref<13x96x32xbf16, #tpu.memory_space<vmem>>, vector<1x96x32xbf16>
    %287 = vector.shape_cast %286 : vector<1x96x32xbf16> to vector<96x32xbf16>
    %cst_96 = arith.constant dense<0.000000e+00> : vector<32x32xf32>
    %288 = tpu.matmul %285, %287, %cst_96 {dimension_numbers = #tpu.dot_dimension_numbers<[1], [0], [0], [1], [0, 0, 1, 1], [], []>} : vector<32x96xbf16>, vector<96x32xbf16>, vector<32x32xf32> -> vector<32x32xf32>
    %c8_97 = arith.constant 8 : index
    %c0_98 = arith.constant 0 : index
    %c0_99 = arith.constant 0 : index
    %289 = vector.load %arg2[%c8_97, %c0_98, %c0_99] : memref<13x1x32xf32, #tpu.memory_space<vmem>>, vector<1x1x32xf32>
    %290 = vector.shape_cast %289 : vector<1x1x32xf32> to vector<1x32xf32>
    %291 = vector.broadcast %290 : vector<1x32xf32> to vector<32x32xf32>
    %292 = arith.addf %288, %291 : vector<32x32xf32>
    %cst_100 = arith.constant 0.000000e+00 : f32
    %293 = vector.broadcast %cst_100 : f32 to vector<32x32xf32>
    %294 = arith.cmpf oge, %292, %293 : vector<32x32xf32>
    %cst_101 = arith.constant 2.000000e-01 : f32
    %295 = vector.broadcast %cst_101 : f32 to vector<32x32xf32>
    %296 = arith.mulf %295, %292 : vector<32x32xf32>
    %297 = arith.select %294, %292, %296 : vector<32x32xi1>, vector<32x32xf32>
    %298 = vector.extract_strided_slice %297 {offsets = [31, 0], sizes = [1, 32], strides = [1, 1]} : vector<32x32xf32> to vector<1x32xf32>
    %299 = vector.extract_strided_slice %297 {offsets = [0, 0], sizes = [31, 32], strides = [1, 1]} : vector<32x32xf32> to vector<31x32xf32>
    %300 = tpu.concatenate %298, %299 in 0 : vector<1x32xf32>, vector<31x32xf32> -> vector<32x32xf32>
    %cst_102 = arith.constant 0.000000e+00 : f32
    %301 = vector.shape_cast %18 : vector<32x1xi1> to vector<32x1xi1>
    %302 = vector.broadcast %301 : vector<32x1xi1> to vector<32x32xi1>
    %303 = vector.broadcast %cst_102 : f32 to vector<32x32xf32>
    %304 = arith.select %302, %300, %303 : vector<32x32xi1>, vector<32x32xf32>
    %305 = vector.extract_strided_slice %297 {offsets = [1, 0], sizes = [31, 32], strides = [1, 1]} : vector<32x32xf32> to vector<31x32xf32>
    %306 = vector.extract_strided_slice %297 {offsets = [0, 0], sizes = [1, 32], strides = [1, 1]} : vector<32x32xf32> to vector<1x32xf32>
    %307 = tpu.concatenate %305, %306 in 0 : vector<31x32xf32>, vector<1x32xf32> -> vector<32x32xf32>
    %cst_103 = arith.constant 0.000000e+00 : f32
    %308 = vector.shape_cast %20 : vector<32x1xi1> to vector<32x1xi1>
    %309 = vector.broadcast %308 : vector<32x1xi1> to vector<32x32xi1>
    %310 = vector.broadcast %cst_103 : f32 to vector<32x32xf32>
    %311 = arith.select %309, %307, %310 : vector<32x32xi1>, vector<32x32xf32>
    %312 = tpu.concatenate %304, %297, %311 in 1 : vector<32x32xf32>, vector<32x32xf32>, vector<32x32xf32> -> vector<32x96xf32>
    %313 = arith.truncf %312 : vector<32x96xf32> to vector<32x96xbf16>
    %c9 = arith.constant 9 : index
    %c0_104 = arith.constant 0 : index
    %c0_105 = arith.constant 0 : index
    %314 = vector.load %arg1[%c9, %c0_104, %c0_105] : memref<13x96x32xbf16, #tpu.memory_space<vmem>>, vector<1x96x32xbf16>
    %315 = vector.shape_cast %314 : vector<1x96x32xbf16> to vector<96x32xbf16>
    %cst_106 = arith.constant dense<0.000000e+00> : vector<32x32xf32>
    %316 = tpu.matmul %313, %315, %cst_106 {dimension_numbers = #tpu.dot_dimension_numbers<[1], [0], [0], [1], [0, 0, 1, 1], [], []>} : vector<32x96xbf16>, vector<96x32xbf16>, vector<32x32xf32> -> vector<32x32xf32>
    %c9_107 = arith.constant 9 : index
    %c0_108 = arith.constant 0 : index
    %c0_109 = arith.constant 0 : index
    %317 = vector.load %arg2[%c9_107, %c0_108, %c0_109] : memref<13x1x32xf32, #tpu.memory_space<vmem>>, vector<1x1x32xf32>
    %318 = vector.shape_cast %317 : vector<1x1x32xf32> to vector<1x32xf32>
    %319 = vector.broadcast %318 : vector<1x32xf32> to vector<32x32xf32>
    %320 = arith.addf %316, %319 : vector<32x32xf32>
    %321 = arith.addf %320, %269 : vector<32x32xf32>
    %322 = vector.extract_strided_slice %321 {offsets = [31, 0], sizes = [1, 32], strides = [1, 1]} : vector<32x32xf32> to vector<1x32xf32>
    %323 = vector.extract_strided_slice %321 {offsets = [0, 0], sizes = [31, 32], strides = [1, 1]} : vector<32x32xf32> to vector<31x32xf32>
    %324 = tpu.concatenate %322, %323 in 0 : vector<1x32xf32>, vector<31x32xf32> -> vector<32x32xf32>
    %cst_110 = arith.constant 0.000000e+00 : f32
    %325 = vector.shape_cast %18 : vector<32x1xi1> to vector<32x1xi1>
    %326 = vector.broadcast %325 : vector<32x1xi1> to vector<32x32xi1>
    %327 = vector.broadcast %cst_110 : f32 to vector<32x32xf32>
    %328 = arith.select %326, %324, %327 : vector<32x32xi1>, vector<32x32xf32>
    %329 = vector.extract_strided_slice %321 {offsets = [1, 0], sizes = [31, 32], strides = [1, 1]} : vector<32x32xf32> to vector<31x32xf32>
    %330 = vector.extract_strided_slice %321 {offsets = [0, 0], sizes = [1, 32], strides = [1, 1]} : vector<32x32xf32> to vector<1x32xf32>
    %331 = tpu.concatenate %329, %330 in 0 : vector<31x32xf32>, vector<1x32xf32> -> vector<32x32xf32>
    %cst_111 = arith.constant 0.000000e+00 : f32
    %332 = vector.shape_cast %20 : vector<32x1xi1> to vector<32x1xi1>
    %333 = vector.broadcast %332 : vector<32x1xi1> to vector<32x32xi1>
    %334 = vector.broadcast %cst_111 : f32 to vector<32x32xf32>
    %335 = arith.select %333, %331, %334 : vector<32x32xi1>, vector<32x32xf32>
    %336 = tpu.concatenate %328, %321, %335 in 1 : vector<32x32xf32>, vector<32x32xf32>, vector<32x32xf32> -> vector<32x96xf32>
    %337 = arith.truncf %336 : vector<32x96xf32> to vector<32x96xbf16>
    %c10 = arith.constant 10 : index
    %c0_112 = arith.constant 0 : index
    %c0_113 = arith.constant 0 : index
    %338 = vector.load %arg1[%c10, %c0_112, %c0_113] : memref<13x96x32xbf16, #tpu.memory_space<vmem>>, vector<1x96x32xbf16>
    %339 = vector.shape_cast %338 : vector<1x96x32xbf16> to vector<96x32xbf16>
    %cst_114 = arith.constant dense<0.000000e+00> : vector<32x32xf32>
    %340 = tpu.matmul %337, %339, %cst_114 {dimension_numbers = #tpu.dot_dimension_numbers<[1], [0], [0], [1], [0, 0, 1, 1], [], []>} : vector<32x96xbf16>, vector<96x32xbf16>, vector<32x32xf32> -> vector<32x32xf32>
    %c10_115 = arith.constant 10 : index
    %c0_116 = arith.constant 0 : index
    %c0_117 = arith.constant 0 : index
    %341 = vector.load %arg2[%c10_115, %c0_116, %c0_117] : memref<13x1x32xf32, #tpu.memory_space<vmem>>, vector<1x1x32xf32>
    %342 = vector.shape_cast %341 : vector<1x1x32xf32> to vector<1x32xf32>
    %343 = vector.broadcast %342 : vector<1x32xf32> to vector<32x32xf32>
    %344 = arith.addf %340, %343 : vector<32x32xf32>
    %cst_118 = arith.constant 0.000000e+00 : f32
    %345 = vector.broadcast %cst_118 : f32 to vector<32x32xf32>
    %346 = arith.cmpf oge, %344, %345 : vector<32x32xf32>
    %cst_119 = arith.constant 2.000000e-01 : f32
    %347 = vector.broadcast %cst_119 : f32 to vector<32x32xf32>
    %348 = arith.mulf %347, %344 : vector<32x32xf32>
    %349 = arith.select %346, %344, %348 : vector<32x32xi1>, vector<32x32xf32>
    %350 = vector.extract_strided_slice %349 {offsets = [31, 0], sizes = [1, 32], strides = [1, 1]} : vector<32x32xf32> to vector<1x32xf32>
    %351 = vector.extract_strided_slice %349 {offsets = [0, 0], sizes = [31, 32], strides = [1, 1]} : vector<32x32xf32> to vector<31x32xf32>
    %352 = tpu.concatenate %350, %351 in 0 : vector<1x32xf32>, vector<31x32xf32> -> vector<32x32xf32>
    %cst_120 = arith.constant 0.000000e+00 : f32
    %353 = vector.shape_cast %18 : vector<32x1xi1> to vector<32x1xi1>
    %354 = vector.broadcast %353 : vector<32x1xi1> to vector<32x32xi1>
    %355 = vector.broadcast %cst_120 : f32 to vector<32x32xf32>
    %356 = arith.select %354, %352, %355 : vector<32x32xi1>, vector<32x32xf32>
    %357 = vector.extract_strided_slice %349 {offsets = [1, 0], sizes = [31, 32], strides = [1, 1]} : vector<32x32xf32> to vector<31x32xf32>
    %358 = vector.extract_strided_slice %349 {offsets = [0, 0], sizes = [1, 32], strides = [1, 1]} : vector<32x32xf32> to vector<1x32xf32>
    %359 = tpu.concatenate %357, %358 in 0 : vector<31x32xf32>, vector<1x32xf32> -> vector<32x32xf32>
    %cst_121 = arith.constant 0.000000e+00 : f32
    %360 = vector.shape_cast %20 : vector<32x1xi1> to vector<32x1xi1>
    %361 = vector.broadcast %360 : vector<32x1xi1> to vector<32x32xi1>
    %362 = vector.broadcast %cst_121 : f32 to vector<32x32xf32>
    %363 = arith.select %361, %359, %362 : vector<32x32xi1>, vector<32x32xf32>
    %364 = tpu.concatenate %356, %349, %363 in 1 : vector<32x32xf32>, vector<32x32xf32>, vector<32x32xf32> -> vector<32x96xf32>
    %365 = arith.truncf %364 : vector<32x96xf32> to vector<32x96xbf16>
    %c11 = arith.constant 11 : index
    %c0_122 = arith.constant 0 : index
    %c0_123 = arith.constant 0 : index
    %366 = vector.load %arg1[%c11, %c0_122, %c0_123] : memref<13x96x32xbf16, #tpu.memory_space<vmem>>, vector<1x96x32xbf16>
    %367 = vector.shape_cast %366 : vector<1x96x32xbf16> to vector<96x32xbf16>
    %cst_124 = arith.constant dense<0.000000e+00> : vector<32x32xf32>
    %368 = tpu.matmul %365, %367, %cst_124 {dimension_numbers = #tpu.dot_dimension_numbers<[1], [0], [0], [1], [0, 0, 1, 1], [], []>} : vector<32x96xbf16>, vector<96x32xbf16>, vector<32x32xf32> -> vector<32x32xf32>
    %c11_125 = arith.constant 11 : index
    %c0_126 = arith.constant 0 : index
    %c0_127 = arith.constant 0 : index
    %369 = vector.load %arg2[%c11_125, %c0_126, %c0_127] : memref<13x1x32xf32, #tpu.memory_space<vmem>>, vector<1x1x32xf32>
    %370 = vector.shape_cast %369 : vector<1x1x32xf32> to vector<1x32xf32>
    %371 = vector.broadcast %370 : vector<1x32xf32> to vector<32x32xf32>
    %372 = arith.addf %368, %371 : vector<32x32xf32>
    %cst_128 = arith.constant 0.000000e+00 : f32
    %373 = vector.broadcast %cst_128 : f32 to vector<32x32xf32>
    %374 = arith.cmpf oge, %372, %373 : vector<32x32xf32>
    %cst_129 = arith.constant 2.000000e-01 : f32
    %375 = vector.broadcast %cst_129 : f32 to vector<32x32xf32>
    %376 = arith.mulf %375, %372 : vector<32x32xf32>
    %377 = arith.select %374, %372, %376 : vector<32x32xi1>, vector<32x32xf32>
    %378 = vector.extract_strided_slice %377 {offsets = [31, 0], sizes = [1, 32], strides = [1, 1]} : vector<32x32xf32> to vector<1x32xf32>
    %379 = vector.extract_strided_slice %377 {offsets = [0, 0], sizes = [31, 32], strides = [1, 1]} : vector<32x32xf32> to vector<31x32xf32>
    %380 = tpu.concatenate %378, %379 in 0 : vector<1x32xf32>, vector<31x32xf32> -> vector<32x32xf32>
    %cst_130 = arith.constant 0.000000e+00 : f32
    %381 = vector.shape_cast %18 : vector<32x1xi1> to vector<32x1xi1>
    %382 = vector.broadcast %381 : vector<32x1xi1> to vector<32x32xi1>
    %383 = vector.broadcast %cst_130 : f32 to vector<32x32xf32>
    %384 = arith.select %382, %380, %383 : vector<32x32xi1>, vector<32x32xf32>
    %385 = vector.extract_strided_slice %377 {offsets = [1, 0], sizes = [31, 32], strides = [1, 1]} : vector<32x32xf32> to vector<31x32xf32>
    %386 = vector.extract_strided_slice %377 {offsets = [0, 0], sizes = [1, 32], strides = [1, 1]} : vector<32x32xf32> to vector<1x32xf32>
    %387 = tpu.concatenate %385, %386 in 0 : vector<31x32xf32>, vector<1x32xf32> -> vector<32x32xf32>
    %cst_131 = arith.constant 0.000000e+00 : f32
    %388 = vector.shape_cast %20 : vector<32x1xi1> to vector<32x1xi1>
    %389 = vector.broadcast %388 : vector<32x1xi1> to vector<32x32xi1>
    %390 = vector.broadcast %cst_131 : f32 to vector<32x32xf32>
    %391 = arith.select %389, %387, %390 : vector<32x32xi1>, vector<32x32xf32>
    %392 = tpu.concatenate %384, %377, %391 in 1 : vector<32x32xf32>, vector<32x32xf32>, vector<32x32xf32> -> vector<32x96xf32>
    %393 = arith.truncf %392 : vector<32x96xf32> to vector<32x96xbf16>
    %c12 = arith.constant 12 : index
    %c0_132 = arith.constant 0 : index
    %c0_133 = arith.constant 0 : index
    %394 = vector.load %arg1[%c12, %c0_132, %c0_133] : memref<13x96x32xbf16, #tpu.memory_space<vmem>>, vector<1x96x32xbf16>
    %395 = vector.shape_cast %394 : vector<1x96x32xbf16> to vector<96x32xbf16>
    %cst_134 = arith.constant dense<0.000000e+00> : vector<32x32xf32>
    %396 = tpu.matmul %393, %395, %cst_134 {dimension_numbers = #tpu.dot_dimension_numbers<[1], [0], [0], [1], [0, 0, 1, 1], [], []>} : vector<32x96xbf16>, vector<96x32xbf16>, vector<32x32xf32> -> vector<32x32xf32>
    %c12_135 = arith.constant 12 : index
    %c0_136 = arith.constant 0 : index
    %c0_137 = arith.constant 0 : index
    %397 = vector.load %arg2[%c12_135, %c0_136, %c0_137] : memref<13x1x32xf32, #tpu.memory_space<vmem>>, vector<1x1x32xf32>
    %398 = vector.shape_cast %397 : vector<1x1x32xf32> to vector<1x32xf32>
    %399 = vector.broadcast %398 : vector<1x32xf32> to vector<32x32xf32>
    %400 = arith.addf %396, %399 : vector<32x32xf32>
    %cst_138 = arith.constant 0.000000e+00 : f32
    %401 = vector.broadcast %cst_138 : f32 to vector<32x64xf32>
    %402 = tpu.concatenate %209, %400, %401 in 1 : vector<32x32xf32>, vector<32x32xf32>, vector<32x64xf32> -> vector<32x128xf32>
    %c0_139 = arith.constant 0 : index
    %c0_140 = arith.constant 0 : index
    %403 = vector.load %arg5[%c0_139, %c0_140] : memref<32x128xf32, #tpu.memory_space<vmem>>, vector<32x128xf32>
    tpu.vector_store %arg5[%c0_139, %c0_140], %402 {strides = array<i32>} : memref<32x128xf32, #tpu.memory_space<vmem>>, vector<32x128xf32>,
    %cst_141 = arith.constant 0.000000e+00 : f32
    %404 = vector.broadcast %cst_141 : f32 to vector<1x63xf32>
    %405 = tpu.concatenate %217, %215, %404 in 1 : vector<1x64xf32>, vector<1x1xf32>, vector<1x63xf32> -> vector<1x128xf32>
    %c0_142 = arith.constant 0 : index
    %c0_143 = arith.constant 0 : index
    %406 = vector.load %arg6[%c0_142, %c0_143] : memref<1x128xf32, #tpu.memory_space<vmem>>, vector<1x128xf32>
    tpu.vector_store %arg6[%c0_142, %c0_143], %405 {strides = array<i32>} : memref<1x128xf32, #tpu.memory_space<vmem>>, vector<1x128xf32>,
    return
  }
}

</mosaic_0001>

<llo_original>
// kernel: forward.1
$region0: #{forward.1}
  #allocation0 [shape = 'u32[]', space=smem, size = 0x4, offset = 0x4, fixed_abs, tag = 'smem constant byte address 0x4 - core index']
  #allocation1 [shape = 'u32[72,128]{1,0:T(1,128)}', space=vmem, size = 0x9000, scoped, tag = 'internal scratch']
  %s0 = inlined_call_operand.vmem [shape: f32[32,32], index: 0, kind: input, shape index: {}]
  %s1 = inlined_call_operand.vmem [shape: bf16[13,96,32], index: 1, kind: input, shape index: {}]
  %s2 = inlined_call_operand.vmem [shape: f32[13,1,32], index: 2, kind: input, shape index: {}]
  %s3 = inlined_call_operand.vmem [shape: f32[64,32], index: 3, kind: input, shape index: {}]
  %s4 = inlined_call_operand.vmem [shape: f32[1,64], index: 4, kind: input, shape index: {}]
  %s5 = inlined_call_operand.vmem [shape: f32[32,128], index: 5, kind: output, shape index: {0}]
  %s6 = inlined_call_operand.vmem [shape: f32[1,128], index: 6, kind: output, shape index: {1}]
  %7 = xla_tuple %s5, %s6
  %s8 = sld [smem:[#allocation0]]
  $region38: #{forward.1} parent=0
    _
  %s10 = ssub.s32 1, %s8
  %s11 = scalar_select 0, %s10, %s8
  // Predicated region
  $region2: #{forward.1} parent=0 // pred_check
    _
  $region3: #{forward.1} parent=0 // pred_check_branch
    %13 = sbr.rel (0) target = $region5
  $region4: #{forward.1} parent=0 // pred_region
    _
  $region5: #{forward.1} parent=0 // pred_fallthru
    _
  // Predicated region
  $region6: #{forward.1} parent=0 // pred_check
    _
  $region7: #{forward.1} parent=0 // pred_check_branch
    %15 = sbr.rel (0) target = $region9
  $region8: #{forward.1} parent=0 // pred_region
    _
  $region9: #{forward.1} parent=0 // pred_fallthru
    _
  // Predicated region
  $region10: #{forward.1} parent=0 // pred_check
    _
  $region11: #{forward.1} parent=0 // pred_check_branch
    %17 = sbr.rel (0) target = $region13
  $region12: #{forward.1} parent=0 // pred_region
    _
  $region13: #{forward.1} parent=0 // pred_fallthru
    _
  // Predicated region
  $region14: #{forward.1} parent=0 // pred_check
    _
  $region15: #{forward.1} parent=0 // pred_check_branch
    %19 = sbr.rel (0) target = $region17
  $region16: #{forward.1} parent=0 // pred_region
    _
  $region17: #{forward.1} parent=0 // pred_fallthru
    _
  // Predicated region
  $region18: #{forward.1} parent=0 // pred_check
    _
  $region19: #{forward.1} parent=0 // pred_check_branch
    %21 = sbr.rel (0) target = $region21
  $region20: #{forward.1} parent=0 // pred_region
    _
  $region21: #{forward.1} parent=0 // pred_fallthru
    _
  %v23 = vlaneseq
  %v24 = vshrl.u32 %v23, 7
  %v25 = vadd.s32 %v24, 8
  %v26 = vadd.s32 %v24, 16
  %v27 = vadd.s32 %v24, 24
  %vm28 = vcmp.lt.s32.totalorder %v24, 0
  %v29 = vsub.s32 0, %v24
  %v30 = vsel %vm28, %v29, %v24
  %v31 = vshrl.u32 %v30, 4
  %v32 = vand.u32 %v30, 15
  %v33 = vsub.s32 0, %v32
  %v34 = vsel %vm28, %v33, %v32
  %vm35 = vcmp.lt.s32.totalorder %v25, 0
  %v36 = vsub.s32 0, %v25
  %v37 = vsel %vm35, %v36, %v25
  %v38 = vshrl.u32 %v37, 4
  %v39 = vand.u32 %v37, 15
  %v40 = vsub.s32 0, %v39
  %v41 = vsel %vm35, %v40, %v39
  %vm42 = vcmp.lt.s32.totalorder %v26, 0
  %v43 = vsub.s32 0, %v26
  %v44 = vsel %vm42, %v43, %v26
  %v45 = vshrl.u32 %v44, 4
  %v46 = vand.u32 %v44, 15
  %v47 = vsub.s32 0, %v46
  %v48 = vsel %vm42, %v47, %v46
  %vm49 = vcmp.lt.s32.totalorder %v27, 0
  %v50 = vsub.s32 0, %v27
  %v51 = vsel %vm49, %v50, %v27
  %v52 = vshrl.u32 %v51, 4
  %v53 = vand.u32 %v51, 15
  %v54 = vsub.s32 0, %v53
  %v55 = vsel %vm49, %v54, %v53
  %vm56 = vcmp.ne.s32.totalorder %v34, 0
  %vm57 = vcmp.ne.s32.totalorder %v41, 0
  %vm58 = vcmp.ne.s32.totalorder %v48, 0
  %vm59 = vcmp.ne.s32.totalorder %v55, 0
  %vm60 = vcmp.lt.s32.totalorder %v34, 0
  %vm61 = vcmp.lt.s32.totalorder %v41, 0
  %vm62 = vcmp.lt.s32.totalorder %v48, 0
  %vm63 = vcmp.lt.s32.totalorder %v55, 0
  %vm64 = vmand %vm60, %vm56
  %vm65 = vmand %vm61, %vm57
  %vm66 = vmand %vm62, %vm58
  %vm67 = vmand %vm63, %vm59
  %v68 = vadd.s32 %v34, 16
  %v69 = vadd.s32 %v41, 16
  %v70 = vadd.s32 %v48, 16
  %v71 = vadd.s32 %v55, 16
  %v72 = vsel %vm64, %v68, %v34
  %v73 = vsel %vm65, %v69, %v41
  %v74 = vsel %vm66, %v70, %v48
  %v75 = vsel %vm67, %v71, %v55
  %vm76 = vcmp.ne.s32.totalorder %v72, 0
  %vm77 = vcmp.ne.s32.totalorder %v73, 0
  %vm78 = vcmp.ne.s32.totalorder %v74, 0
  %vm79 = vcmp.ne.s32.totalorder %v75, 0
  %vm80 = vcmp.ne.s32.totalorder %v72, 15
  %vm81 = vcmp.ne.s32.totalorder %v73, 15
  %vm82 = vcmp.ne.s32.totalorder %v74, 15
  %vm83 = vcmp.ne.s32.totalorder %v75, 15
  %v84 = vld [vmem:[%s0] sm:$0xff]
  %v85 = vld [vmem:[%s0 + $0x8] sm:$0xff]
  %v86 = vld [vmem:[%s0 + $0x10] sm:$0xff]
  %v87 = vld [vmem:[%s0 + $0x18] sm:$0xff]
  %v89 = vrot.slane %v87, 7
  %vm94 = vcmask 1040384
  %v95 = vrot.slane %v84, 7
  %v96 = vrot.slane %v85, 7
  %v97 = vsel %vm94, %v95, %v96
  %v98 = vrot.slane %v86, 7
  %v99 = vsel %vm94, %v96, %v98
  %v100 = vsel %vm94, %v98, %v89
  %v105 = vsel %vm94, %v89, %v95
  %v106 = vsel %vm76, 1, 0
  %v107 = vsel %vm77, 1, 0
  %v108 = vsel %vm78, 1, 0
  %v109 = vsel %vm79, 1, 0
  %vm110 = vcmp.eq.s32.totalorder %v106, 1
  %vm111 = vcmp.eq.s32.totalorder %v107, 1
  %vm112 = vcmp.eq.s32.totalorder %v108, 1
  %vm113 = vcmp.eq.s32.totalorder %v109, 1
  %v114 = vsel %vm110, %v105, 0.0
  %v115 = vsel %vm111, %v97, 0.0
  %v116 = vsel %vm112, %v99, 0.0
  %v117 = vsel %vm113, %v100, 0.0
  %vm118 = vcmask 1046528
  %v119 = vrot.slane %v84, 1
  %v120 = vrot.slane %v85, 1
  %v121 = vsel %vm118, %v119, %v120
  %v122 = vrot.slane %v86, 1
  %v123 = vsel %vm118, %v120, %v122
  %v124 = vrot.slane %v87, 1
  %v125 = vsel %vm118, %v122, %v124
  %v131 = vsel %vm118, %v124, %v119
  %v132 = vsel %vm80, 1, 0
  %v133 = vsel %vm81, 1, 0
  %v134 = vsel %vm82, 1, 0
  %v135 = vsel %vm83, 1, 0
  %vm136 = vcmp.eq.s32.totalorder %v132, 1
  %vm137 = vcmp.eq.s32.totalorder %v133, 1
  %vm138 = vcmp.eq.s32.totalorder %v134, 1
  %vm139 = vcmp.eq.s32.totalorder %v135, 1
  %v140 = vsel %vm136, %v121, 0.0
  %v141 = vsel %vm137, %v123, 0.0
  %v142 = vsel %vm138, %v125, 0.0
  %v143 = vsel %vm139, %v131, 0.0
  %144 = vrot.lane.b32.xlu0 %v84, 32
  %v145 = vpop.permute.xlu0 %144
  %146 = vrot.lane.b32.xlu0 %v85, 32
  %v147 = vpop.permute.xlu0 %146
  %148 = vrot.lane.b32.xlu0 %v86, 32
  %v149 = vpop.permute.xlu0 %148
  %150 = vrot.lane.b32.xlu0 %v87, 32
  %v151 = vpop.permute.xlu0 %150
  %160 = vrot.lane.b32.xlu0 %v140, 64
  %v161 = vpop.permute.xlu0 %160
  %162 = vrot.lane.b32.xlu0 %v141, 64
  %v163 = vpop.permute.xlu0 %162
  %164 = vrot.lane.b32.xlu0 %v142, 64
  %v165 = vpop.permute.xlu0 %164
  %166 = vrot.lane.b32.xlu0 %v143, 64
  %v167 = vpop.permute.xlu0 %166
  %vm172 = vcmask 261120
  %v173 = vsel %vm172, %v114, %v145
  %v174 = vsel %vm172, %v115, %v147
  %v175 = vsel %vm172, %v116, %v149
  %v176 = vsel %vm172, %v117, %v151
  %vm177 = vcmask 523264
  %v178 = vsel %vm177, %v173, %v161
  %v179 = vsel %vm177, %v174, %v163
  %v180 = vsel %vm177, %v175, %v165
  %v181 = vsel %vm177, %v176, %v167
  %v182 = vpack.c.bf16 %v179, %v178
  %v183 = vpack.c.bf16 %v181, %v180
  %v184 = vld [vmem:[%s1] sm:$0xf]
  %v185 = vld [vmem:[%s1 + $0x4] sm:$0xf]
  %v186 = vld [vmem:[%s1 + $0x8] sm:$0xf]
  %v187 = vld [vmem:[%s1 + $0xc] sm:$0xf]
  %v188 = vld [vmem:[%s1 + $0x10] sm:$0xf]
  %v189 = vld [vmem:[%s1 + $0x14] sm:$0xf]
  %v190 = vld [vmem:[%s1 + $0x18] sm:$0xf]
  %v191 = vld [vmem:[%s1 + $0x1c] sm:$0xf]
  %v192 = vld [vmem:[%s1 + $0x20] sm:$0xf]
  %v193 = vld [vmem:[%s1 + $0x24] sm:$0xf]
  %v194 = vld [vmem:[%s1 + $0x28] sm:$0xf]
  %v195 = vld [vmem:[%s1 + $0x2c] sm:$0xf]
  %v196 = vld [vmem:[%s2] sm:$0x1]
  %v198 = vperm.slane %v196, 0
  %v212 = vunpack.c.l.b16 %v184
  %v213 = vunpack.c.l.b16 %v185
  %v214 = vunpack.c.l.b16 %v186
  %v215 = vunpack.c.l.b16 %v187
  %v216 = vunpack.c.l.b16 %v188
  %v217 = vunpack.c.l.b16 %v189
  %v218 = vunpack.c.l.b16 %v190
  %v219 = vunpack.c.l.b16 %v191
  %v220 = vunpack.c.l.b16 %v192
  %v221 = vunpack.c.l.b16 %v193
  %v222 = vunpack.c.l.b16 %v194
  %v223 = vunpack.c.l.b16 %v195
  %v224 = vpack.c.b16 %v213, %v212
  %v225 = vpack.c.b16 %v215, %v214
  %v226 = vpack.c.b16 %v217, %v216
  %v227 = vpack.c.b16 %v219, %v218
  %v228 = vpack.c.b16 %v221, %v220
  %v229 = vpack.c.b16 %v223, %v222
  %vm236 = vcmask 785408
  %v238 = vsel %vm236, %v182, 0
  %v241 = vsel %vm236, %v183, 0
  %243 = vmatpush.bf16.msra.mxu0 0
  %244 = vmatpush.bf16.msra.mxu0 0
  %245 = vmatpush.bf16.msra.mxu0 %v229
  %246 = vmatpush.bf16.msra.mxu0 %v228
  %247 = vmatpush.bf16.msra.mxu0 %v227
  %248 = vmatpush.bf16.msra.mxu0 %v226
  %249 = vmatpush.bf16.msra.mxu0 %v225
  %250 = vmatpush.bf16.msra.mxu0 %v224
  %251 = vmatmul.bf16.gmra.mxu0 %v238
  %v252 = vpop.f32.mrf.mxu0
  %v253 = vadd.f32 %v198, %v252
  %v254 = vpop.f32.mrf.mxu0
  %v255 = vadd.f32 %v198, %v254
  %256 = vmatmul.bf16.gmra.mxu0 %v241
  %v257 = vpop.f32.mrf.mxu0
  %v258 = vadd.f32 %v198, %v257
  %v259 = vpop.f32.mrf.mxu0
  %v260 = vadd.f32 %v198, %v259
  %261 = vdwg.mxu0
  %vm262 = vcmp.ge.f32.partialorder %v253, 0.0
  %vm263 = vcmp.ge.f32.partialorder %v255, 0.0
  %vm264 = vcmp.ge.f32.partialorder %v258, 0.0
  %vm265 = vcmp.ge.f32.partialorder %v260, 0.0
  %v266 = vmul.f32 %v253, 0.2
  %v267 = vmul.f32 %v255, 0.2
  %v268 = vmul.f32 %v258, 0.2
  %v269 = vmul.f32 %v260, 0.2
  %v270 = vsel %vm262, %v253, %v266
  %v271 = vsel %vm263, %v255, %v267
  %v272 = vsel %vm264, %v258, %v268
  %v273 = vsel %vm265, %v260, %v269
  %v275 = vrot.slane %v273, 7
  %v280 = vrot.slane %v270, 7
  %v281 = vrot.slane %v271, 7
  %v282 = vsel %vm94, %v280, %v281
  %v283 = vrot.slane %v272, 7
  %v284 = vsel %vm94, %v281, %v283
  %v285 = vsel %vm94, %v283, %v275
  %v290 = vsel %vm94, %v275, %v280
  %v291 = vsel %vm110, %v290, 0.0
  %v292 = vsel %vm111, %v282, 0.0
  %v293 = vsel %vm112, %v284, 0.0
  %v294 = vsel %vm113, %v285, 0.0
  %v295 = vrot.slane %v270, 1
  %v296 = vrot.slane %v271, 1
  %v297 = vsel %vm118, %v295, %v296
  %v298 = vrot.slane %v272, 1
  %v299 = vsel %vm118, %v296, %v298
  %v300 = vrot.slane %v273, 1
  %v301 = vsel %vm118, %v298, %v300
  %v307 = vsel %vm118, %v300, %v295
  %v308 = vsel %vm136, %v297, 0.0
  %v309 = vsel %vm137, %v299, 0.0
  %v310 = vsel %vm138, %v301, 0.0
  %v311 = vsel %vm139, %v307, 0.0
  %312 = vrot.lane.b32.xlu0 %v270, 32
  %v313 = vpop.permute.xlu0 %312
  %314 = vrot.lane.b32.xlu0 %v271, 32
  %v315 = vpop.permute.xlu0 %314
  %316 = vrot.lane.b32.xlu0 %v272, 32
  %v317 = vpop.permute.xlu0 %316
  %318 = vrot.lane.b32.xlu0 %v273, 32
  %v319 = vpop.permute.xlu0 %318
  %328 = vrot.lane.b32.xlu0 %v308, 64
  %v329 = vpop.permute.xlu0 %328
  %330 = vrot.lane.b32.xlu0 %v309, 64
  %v331 = vpop.permute.xlu0 %330
  %332 = vrot.lane.b32.xlu0 %v310, 64
  %v333 = vpop.permute.xlu0 %332
  %334 = vrot.lane.b32.xlu0 %v311, 64
  %v335 = vpop.permute.xlu0 %334
  %v340 = vsel %vm172, %v291, %v313
  %v341 = vsel %vm172, %v292, %v315
  %v342 = vsel %vm172, %v293, %v317
  %v343 = vsel %vm172, %v294, %v319
  %v344 = vsel %vm177, %v340, %v329
  %v345 = vsel %vm177, %v341, %v331
  %v346 = vsel %vm177, %v342, %v333
  %v347 = vsel %vm177, %v343, %v335
  %v348 = vpack.c.bf16 %v345, %v344
  %v349 = vpack.c.bf16 %v347, %v346
  %s350 = scalar_lea.vmem %s1, 48
  %v351 = vld [vmem:[%s350] sm:$0xf]
  %v352 = vld [vmem:[%s350 + $0x4] sm:$0xf]
  %v353 = vld [vmem:[%s350 + $0x8] sm:$0xf]
  %v354 = vld [vmem:[%s350 + $0xc] sm:$0xf]
  %v355 = vld [vmem:[%s350 + $0x10] sm:$0xf]
  %v356 = vld [vmem:[%s350 + $0x14] sm:$0xf]
  %v357 = vld [vmem:[%s350 + $0x18] sm:$0xf]
  %v358 = vld [vmem:[%s350 + $0x1c] sm:$0xf]
  %v359 = vld [vmem:[%s350 + $0x20] sm:$0xf]
  %v360 = vld [vmem:[%s350 + $0x24] sm:$0xf]
  %v361 = vld [vmem:[%s350 + $0x28] sm:$0xf]
  %v362 = vld [vmem:[%s350 + $0x2c] sm:$0xf]
  %s363 = scalar_lea.vmem %s2, 1
  %v364 = vld [vmem:[%s363] sm:$0x1]
  %v366 = vperm.slane %v364, 0
  %v380 = vunpack.c.l.b16 %v351
  %v381 = vunpack.c.l.b16 %v352
  %v382 = vunpack.c.l.b16 %v353
  %v383 = vunpack.c.l.b16 %v354
  %v384 = vunpack.c.l.b16 %v355
  %v385 = vunpack.c.l.b16 %v356
  %v386 = vunpack.c.l.b16 %v357
  %v387 = vunpack.c.l.b16 %v358
  %v388 = vunpack.c.l.b16 %v359
  %v389 = vunpack.c.l.b16 %v360
  %v390 = vunpack.c.l.b16 %v361
  %v391 = vunpack.c.l.b16 %v362
  %v392 = vpack.c.b16 %v381, %v380
  %v393 = vpack.c.b16 %v383, %v382
  %v394 = vpack.c.b16 %v385, %v384
  %v395 = vpack.c.b16 %v387, %v386
  %v396 = vpack.c.b16 %v389, %v388
  %v397 = vpack.c.b16 %v391, %v390
  %v405 = vsel %vm236, %v348, 0
  %v408 = vsel %vm236, %v349, 0
  %410 = vmatpush.bf16.msra.mxu0 0
  %411 = vmatpush.bf16.msra.mxu0 0
  %412 = vmatpush.bf16.msra.mxu0 %v397
  %413 = vmatpush.bf16.msra.mxu0 %v396
  %414 = vmatpush.bf16.msra.mxu0 %v395
  %415 = vmatpush.bf16.msra.mxu0 %v394
  %416 = vmatpush.bf16.msra.mxu0 %v393
  %417 = vmatpush.bf16.msra.mxu0 %v392
  %418 = vmatmul.bf16.gmra.mxu0 %v405
  %v419 = vpop.f32.mrf.mxu0
  %v420 = vadd.f32 %v366, %v419
  %v421 = vpop.f32.mrf.mxu0
  %v422 = vadd.f32 %v366, %v421
  %423 = vmatmul.bf16.gmra.mxu0 %v408
  %v424 = vpop.f32.mrf.mxu0
  %v425 = vadd.f32 %v366, %v424
  %v426 = vpop.f32.mrf.mxu0
  %v427 = vadd.f32 %v366, %v426
  %428 = vdwg.mxu0
  %vm429 = vcmp.ge.f32.partialorder %v420, 0.0
  %vm430 = vcmp.ge.f32.partialorder %v422, 0.0
  %vm431 = vcmp.ge.f32.partialorder %v425, 0.0
  %vm432 = vcmp.ge.f32.partialorder %v427, 0.0
  %v433 = vmul.f32 %v420, 0.2
  %v434 = vmul.f32 %v422, 0.2
  %v435 = vmul.f32 %v425, 0.2
  %v436 = vmul.f32 %v427, 0.2
  %v437 = vsel %vm429, %v420, %v433
  %v438 = vsel %vm430, %v422, %v434
  %v439 = vsel %vm431, %v425, %v435
  %v440 = vsel %vm432, %v427, %v436
  %v442 = vrot.slane %v440, 7
  %v447 = vrot.slane %v437, 7
  %v448 = vrot.slane %v438, 7
  %v449 = vsel %vm94, %v447, %v448
  %v450 = vrot.slane %v439, 7
  %v451 = vsel %vm94, %v448, %v450
  %v452 = vsel %vm94, %v450, %v442
  %v457 = vsel %vm94, %v442, %v447
  %v458 = vsel %vm110, %v457, 0.0
  %v459 = vsel %vm111, %v449, 0.0
  %v460 = vsel %vm112, %v451, 0.0
  %v461 = vsel %vm113, %v452, 0.0
  %v462 = vrot.slane %v437, 1
  %v463 = vrot.slane %v438, 1
  %v464 = vsel %vm118, %v462, %v463
  %v465 = vrot.slane %v439, 1
  %v466 = vsel %vm118, %v463, %v465
  %v467 = vrot.slane %v440, 1
  %v468 = vsel %vm118, %v465, %v467
  %v474 = vsel %vm118, %v467, %v462
  %v475 = vsel %vm136, %v464, 0.0
  %v476 = vsel %vm137, %v466, 0.0
  %v477 = vsel %vm138, %v468, 0.0
  %v478 = vsel %vm139, %v474, 0.0
  %479 = vrot.lane.b32.xlu0 %v437, 32
  %v480 = vpop.permute.xlu0 %479
  %481 = vrot.lane.b32.xlu0 %v438, 32
  %v482 = vpop.permute.xlu0 %481
  %483 = vrot.lane.b32.xlu0 %v439, 32
  %v484 = vpop.permute.xlu0 %483
  %485 = vrot.lane.b32.xlu0 %v440, 32
  %v486 = vpop.permute.xlu0 %485
  %495 = vrot.lane.b32.xlu0 %v475, 64
  %v496 = vpop.permute.xlu0 %495
  %497 = vrot.lane.b32.xlu0 %v476, 64
  %v498 = vpop.permute.xlu0 %497
  %499 = vrot.lane.b32.xlu0 %v477, 64
  %v500 = vpop.permute.xlu0 %499
  %501 = vrot.lane.b32.xlu0 %v478, 64
  %v502 = vpop.permute.xlu0 %501
  %v507 = vsel %vm172, %v458, %v480
  %v508 = vsel %vm172, %v459, %v482
  %v509 = vsel %vm172, %v460, %v484
  %v510 = vsel %vm172, %v461, %v486
  %v511 = vsel %vm177, %v507, %v496
  %v512 = vsel %vm177, %v508, %v498
  %v513 = vsel %vm177, %v509, %v500
  %v514 = vsel %vm177, %v510, %v502
  %v515 = vpack.c.bf16 %v512, %v511
  %v516 = vpack.c.bf16 %v514, %v513
  %s517 = scalar_lea.vmem %s1, 96
  %v518 = vld [vmem:[%s517] sm:$0xf]
  %v519 = vld [vmem:[%s517 + $0x4] sm:$0xf]
  %v520 = vld [vmem:[%s517 + $0x8] sm:$0xf]
  %v521 = vld [vmem:[%s517 + $0xc] sm:$0xf]
  %v522 = vld [vmem:[%s517 + $0x10] sm:$0xf]
  %v523 = vld [vmem:[%s517 + $0x14] sm:$0xf]
  %v524 = vld [vmem:[%s517 + $0x18] sm:$0xf]
  %v525 = vld [vmem:[%s517 + $0x1c] sm:$0xf]
  %v526 = vld [vmem:[%s517 + $0x20] sm:$0xf]
  %v527 = vld [vmem:[%s517 + $0x24] sm:$0xf]
  %v528 = vld [vmem:[%s517 + $0x28] sm:$0xf]
  %v529 = vld [vmem:[%s517 + $0x2c] sm:$0xf]
  %s530 = scalar_lea.vmem %s2, 2
  %v531 = vld [vmem:[%s530] sm:$0x1]
  %v533 = vperm.slane %v531, 0
  %v547 = vunpack.c.l.b16 %v518
  %v548 = vunpack.c.l.b16 %v519
  %v549 = vunpack.c.l.b16 %v520
  %v550 = vunpack.c.l.b16 %v521
  %v551 = vunpack.c.l.b16 %v522
  %v552 = vunpack.c.l.b16 %v523
  %v553 = vunpack.c.l.b16 %v524
  %v554 = vunpack.c.l.b16 %v525
  %v555 = vunpack.c.l.b16 %v526
  %v556 = vunpack.c.l.b16 %v527
  %v557 = vunpack.c.l.b16 %v528
  %v558 = vunpack.c.l.b16 %v529
  %v559 = vpack.c.b16 %v548, %v547
  %v560 = vpack.c.b16 %v550, %v549
  %v561 = vpack.c.b16 %v552, %v551
  %v562 = vpack.c.b16 %v554, %v553
  %v563 = vpack.c.b16 %v556, %v555
  %v564 = vpack.c.b16 %v558, %v557
  %v572 = vsel %vm236, %v515, 0
  %v575 = vsel %vm236, %v516, 0
  %577 = vmatpush.bf16.msra.mxu0 0
  %578 = vmatpush.bf16.msra.mxu0 0
  %579 = vmatpush.bf16.msra.mxu0 %v564
  %580 = vmatpush.bf16.msra.mxu0 %v563
  %581 = vmatpush.bf16.msra.mxu0 %v562
  %582 = vmatpush.bf16.msra.mxu0 %v561
  %583 = vmatpush.bf16.msra.mxu0 %v560
  %584 = vmatpush.bf16.msra.mxu0 %v559
  %585 = vmatmul.bf16.gmra.mxu0 %v572
  %v586 = vpop.f32.mrf.mxu0
  %v587 = vadd.f32 %v533, %v586
  %v588 = vpop.f32.mrf.mxu0
  %v589 = vadd.f32 %v533, %v588
  %590 = vmatmul.bf16.gmra.mxu0 %v575
  %v591 = vpop.f32.mrf.mxu0
  %v592 = vadd.f32 %v533, %v591
  %v593 = vpop.f32.mrf.mxu0
  %v594 = vadd.f32 %v533, %v593
  %595 = vdwg.mxu0
  %v596 = vadd.f32 %v587, %v270
  %v597 = vadd.f32 %v589, %v271
  %v598 = vadd.f32 %v592, %v272
  %v599 = vadd.f32 %v594, %v273
  %v601 = vrot.slane %v599, 7
  %v606 = vrot.slane %v596, 7
  %v607 = vrot.slane %v597, 7
  %v608 = vsel %vm94, %v606, %v607
  %v609 = vrot.slane %v598, 7
  %v610 = vsel %vm94, %v607, %v609
  %v611 = vsel %vm94, %v609, %v601
  %v616 = vsel %vm94, %v601, %v606
  %v617 = vsel %vm110, %v616, 0.0
  %v618 = vsel %vm111, %v608, 0.0
  %v619 = vsel %vm112, %v610, 0.0
  %v620 = vsel %vm113, %v611, 0.0
  %v621 = vrot.slane %v596, 1
  %v622 = vrot.slane %v597, 1
  %v623 = vsel %vm118, %v621, %v622
  %v624 = vrot.slane %v598, 1
  %v625 = vsel %vm118, %v622, %v624
  %v626 = vrot.slane %v599, 1
  %v627 = vsel %vm118, %v624, %v626
  %v633 = vsel %vm118, %v626, %v621
  %v634 = vsel %vm136, %v623, 0.0
  %v635 = vsel %vm137, %v625, 0.0
  %v636 = vsel %vm138, %v627, 0.0
  %v637 = vsel %vm139, %v633, 0.0
  %638 = vrot.lane.b32.xlu0 %v596, 32
  %v639 = vpop.permute.xlu0 %638
  %640 = vrot.lane.b32.xlu0 %v597, 32
  %v641 = vpop.permute.xlu0 %640
  %642 = vrot.lane.b32.xlu0 %v598, 32
  %v643 = vpop.permute.xlu0 %642
  %644 = vrot.lane.b32.xlu0 %v599, 32
  %v645 = vpop.permute.xlu0 %644
  %654 = vrot.lane.b32.xlu0 %v634, 64
  %v655 = vpop.permute.xlu0 %654
  %656 = vrot.lane.b32.xlu0 %v635, 64
  %v657 = vpop.permute.xlu0 %656
  %658 = vrot.lane.b32.xlu0 %v636, 64
  %v659 = vpop.permute.xlu0 %658
  %660 = vrot.lane.b32.xlu0 %v637, 64
  %v661 = vpop.permute.xlu0 %660
  %v666 = vsel %vm172, %v617, %v639
  %v667 = vsel %vm172, %v618, %v641
  %v668 = vsel %vm172, %v619, %v643
  %v669 = vsel %vm172, %v620, %v645
  %v670 = vsel %vm177, %v666, %v655
  %v671 = vsel %vm177, %v667, %v657
  %v672 = vsel %vm177, %v668, %v659
  %v673 = vsel %vm177, %v669, %v661
  %v674 = vpack.c.bf16 %v671, %v670
  %v675 = vpack.c.bf16 %v673, %v672
  %s676 = scalar_lea.vmem %s1, 144
  %v677 = vld [vmem:[%s676] sm:$0xf]
  %v678 = vld [vmem:[%s676 + $0x4] sm:$0xf]
  %v679 = vld [vmem:[%s676 + $0x8] sm:$0xf]
  %v680 = vld [vmem:[%s676 + $0xc] sm:$0xf]
  %v681 = vld [vmem:[%s676 + $0x10] sm:$0xf]
  %v682 = vld [vmem:[%s676 + $0x14] sm:$0xf]
  %v683 = vld [vmem:[%s676 + $0x18] sm:$0xf]
  %v684 = vld [vmem:[%s676 + $0x1c] sm:$0xf]
  %v685 = vld [vmem:[%s676 + $0x20] sm:$0xf]
  %v686 = vld [vmem:[%s676 + $0x24] sm:$0xf]
  %v687 = vld [vmem:[%s676 + $0x28] sm:$0xf]
  %v688 = vld [vmem:[%s676 + $0x2c] sm:$0xf]
  %s689 = scalar_lea.vmem %s2, 3
  %v690 = vld [vmem:[%s689] sm:$0x1]
  %v692 = vperm.slane %v690, 0
  %v706 = vunpack.c.l.b16 %v677
  %v707 = vunpack.c.l.b16 %v678
  %v708 = vunpack.c.l.b16 %v679
  %v709 = vunpack.c.l.b16 %v680
  %v710 = vunpack.c.l.b16 %v681
  %v711 = vunpack.c.l.b16 %v682
  %v712 = vunpack.c.l.b16 %v683
  %v713 = vunpack.c.l.b16 %v684
  %v714 = vunpack.c.l.b16 %v685
  %v715 = vunpack.c.l.b16 %v686
  %v716 = vunpack.c.l.b16 %v687
  %v717 = vunpack.c.l.b16 %v688
  %v718 = vpack.c.b16 %v707, %v706
  %v719 = vpack.c.b16 %v709, %v708
  %v720 = vpack.c.b16 %v711, %v710
  %v721 = vpack.c.b16 %v713, %v712
  %v722 = vpack.c.b16 %v715, %v714
  %v723 = vpack.c.b16 %v717, %v716
  %v731 = vsel %vm236, %v674, 0
  %v734 = vsel %vm236, %v675, 0
  %736 = vmatpush.bf16.msra.mxu0 0
  %737 = vmatpush.bf16.msra.mxu0 0
  %738 = vmatpush.bf16.msra.mxu0 %v723
  %739 = vmatpush.bf16.msra.mxu0 %v722
  %740 = vmatpush.bf16.msra.mxu0 %v721
  %741 = vmatpush.bf16.msra.mxu0 %v720
  %742 = vmatpush.bf16.msra.mxu0 %v719
  %743 = vmatpush.bf16.msra.mxu0 %v718
  %744 = vmatmul.bf16.gmra.mxu0 %v731
  %v745 = vpop.f32.mrf.mxu0
  %v746 = vadd.f32 %v692, %v745
  %v747 = vpop.f32.mrf.mxu0
  %v748 = vadd.f32 %v692, %v747
  %749 = vmatmul.bf16.gmra.mxu0 %v734
  %v750 = vpop.f32.mrf.mxu0
  %v751 = vadd.f32 %v692, %v750
  %v752 = vpop.f32.mrf.mxu0
  %v753 = vadd.f32 %v692, %v752
  %754 = vdwg.mxu0
  %vm755 = vcmp.ge.f32.partialorder %v746, 0.0
  %vm756 = vcmp.ge.f32.partialorder %v748, 0.0
  %vm757 = vcmp.ge.f32.partialorder %v751, 0.0
  %vm758 = vcmp.ge.f32.partialorder %v753, 0.0
  %v759 = vmul.f32 %v746, 0.2
  %v760 = vmul.f32 %v748, 0.2
  %v761 = vmul.f32 %v751, 0.2
  %v762 = vmul.f32 %v753, 0.2
  %v763 = vsel %vm755, %v746, %v759
  %v764 = vsel %vm756, %v748, %v760
  %v765 = vsel %vm757, %v751, %v761
  %v766 = vsel %vm758, %v753, %v762
  %v768 = vrot.slane %v766, 7
  %v773 = vrot.slane %v763, 7
  %v774 = vrot.slane %v764, 7
  %v775 = vsel %vm94, %v773, %v774
  %v776 = vrot.slane %v765, 7
  %v777 = vsel %vm94, %v774, %v776
  %v778 = vsel %vm94, %v776, %v768
  %v783 = vsel %vm94, %v768, %v773
  %v784 = vsel %vm110, %v783, 0.0
  %v785 = vsel %vm111, %v775, 0.0
  %v786 = vsel %vm112, %v777, 0.0
  %v787 = vsel %vm113, %v778, 0.0
  %v788 = vrot.slane %v763, 1
  %v789 = vrot.slane %v764, 1
  %v790 = vsel %vm118, %v788, %v789
  %v791 = vrot.slane %v765, 1
  %v792 = vsel %vm118, %v789, %v791
  %v793 = vrot.slane %v766, 1
  %v794 = vsel %vm118, %v791, %v793
  %v800 = vsel %vm118, %v793, %v788
  %v801 = vsel %vm136, %v790, 0.0
  %v802 = vsel %vm137, %v792, 0.0
  %v803 = vsel %vm138, %v794, 0.0
  %v804 = vsel %vm139, %v800, 0.0
  %805 = vrot.lane.b32.xlu0 %v763, 32
  %v806 = vpop.permute.xlu0 %805
  %807 = vrot.lane.b32.xlu0 %v764, 32
  %v808 = vpop.permute.xlu0 %807
  %809 = vrot.lane.b32.xlu0 %v765, 32
  %v810 = vpop.permute.xlu0 %809
  %811 = vrot.lane.b32.xlu0 %v766, 32
  %v812 = vpop.permute.xlu0 %811
  %821 = vrot.lane.b32.xlu0 %v801, 64
  %v822 = vpop.permute.xlu0 %821
  %823 = vrot.lane.b32.xlu0 %v802, 64
  %v824 = vpop.permute.xlu0 %823
  %825 = vrot.lane.b32.xlu0 %v803, 64
  %v826 = vpop.permute.xlu0 %825
  %827 = vrot.lane.b32.xlu0 %v804, 64
  %v828 = vpop.permute.xlu0 %827
  %v833 = vsel %vm172, %v784, %v806
  %v834 = vsel %vm172, %v785, %v808
  %v835 = vsel %vm172, %v786, %v810
  %v836 = vsel %vm172, %v787, %v812
  %v837 = vsel %vm177, %v833, %v822
  %v838 = vsel %vm177, %v834, %v824
  %v839 = vsel %vm177, %v835, %v826
  %v840 = vsel %vm177, %v836, %v828
  %v841 = vpack.c.bf16 %v838, %v837
  %v842 = vpack.c.bf16 %v840, %v839
  %s843 = scalar_lea.vmem %s1, 192
  %v844 = vld [vmem:[%s843] sm:$0xf]
  %v845 = vld [vmem:[%s843 + $0x4] sm:$0xf]
  %v846 = vld [vmem:[%s843 + $0x8] sm:$0xf]
  %v847 = vld [vmem:[%s843 + $0xc] sm:$0xf]
  %v848 = vld [vmem:[%s843 + $0x10] sm:$0xf]
  %v849 = vld [vmem:[%s843 + $0x14] sm:$0xf]
  %v850 = vld [vmem:[%s843 + $0x18] sm:$0xf]
  %v851 = vld [vmem:[%s843 + $0x1c] sm:$0xf]
  %v852 = vld [vmem:[%s843 + $0x20] sm:$0xf]
  %v853 = vld [vmem:[%s843 + $0x24] sm:$0xf]
  %v854 = vld [vmem:[%s843 + $0x28] sm:$0xf]
  %v855 = vld [vmem:[%s843 + $0x2c] sm:$0xf]
  %s856 = scalar_lea.vmem %s2, 4
  %v857 = vld [vmem:[%s856] sm:$0x1]
  %v859 = vperm.slane %v857, 0
  %v873 = vunpack.c.l.b16 %v844
  %v874 = vunpack.c.l.b16 %v845
  %v875 = vunpack.c.l.b16 %v846
  %v876 = vunpack.c.l.b16 %v847
  %v877 = vunpack.c.l.b16 %v848
  %v878 = vunpack.c.l.b16 %v849
  %v879 = vunpack.c.l.b16 %v850
  %v880 = vunpack.c.l.b16 %v851
  %v881 = vunpack.c.l.b16 %v852
  %v882 = vunpack.c.l.b16 %v853
  %v883 = vunpack.c.l.b16 %v854
  %v884 = vunpack.c.l.b16 %v855
  %v885 = vpack.c.b16 %v874, %v873
  %v886 = vpack.c.b16 %v876, %v875
  %v887 = vpack.c.b16 %v878, %v877
  %v888 = vpack.c.b16 %v880, %v879
  %v889 = vpack.c.b16 %v882, %v881
  %v890 = vpack.c.b16 %v884, %v883
  %v898 = vsel %vm236, %v841, 0
  %v901 = vsel %vm236, %v842, 0
  %903 = vmatpush.bf16.msra.mxu0 0
  %904 = vmatpush.bf16.msra.mxu0 0
  %905 = vmatpush.bf16.msra.mxu0 %v890
  %906 = vmatpush.bf16.msra.mxu0 %v889
  %907 = vmatpush.bf16.msra.mxu0 %v888
  %908 = vmatpush.bf16.msra.mxu0 %v887
  %909 = vmatpush.bf16.msra.mxu0 %v886
  %910 = vmatpush.bf16.msra.mxu0 %v885
  %911 = vmatmul.bf16.gmra.mxu0 %v898
  %v912 = vpop.f32.mrf.mxu0
  %v913 = vadd.f32 %v859, %v912
  %v914 = vpop.f32.mrf.mxu0
  %v915 = vadd.f32 %v859, %v914
  %916 = vmatmul.bf16.gmra.mxu0 %v901
  %v917 = vpop.f32.mrf.mxu0
  %v918 = vadd.f32 %v859, %v917
  %v919 = vpop.f32.mrf.mxu0
  %v920 = vadd.f32 %v859, %v919
  %921 = vdwg.mxu0
  %vm922 = vcmp.ge.f32.partialorder %v913, 0.0
  %vm923 = vcmp.ge.f32.partialorder %v915, 0.0
  %vm924 = vcmp.ge.f32.partialorder %v918, 0.0
  %vm925 = vcmp.ge.f32.partialorder %v920, 0.0
  %v926 = vmul.f32 %v913, 0.2
  %v927 = vmul.f32 %v915, 0.2
  %v928 = vmul.f32 %v918, 0.2
  %v929 = vmul.f32 %v920, 0.2
  %v930 = vsel %vm922, %v913, %v926
  %v931 = vsel %vm923, %v915, %v927
  %v932 = vsel %vm924, %v918, %v928
  %v933 = vsel %vm925, %v920, %v929
  %v935 = vrot.slane %v933, 7
  %v940 = vrot.slane %v930, 7
  %v941 = vrot.slane %v931, 7
  %v942 = vsel %vm94, %v940, %v941
  %v943 = vrot.slane %v932, 7
  %v944 = vsel %vm94, %v941, %v943
  %v945 = vsel %vm94, %v943, %v935
  %v950 = vsel %vm94, %v935, %v940
  %v951 = vsel %vm110, %v950, 0.0
  %v952 = vsel %vm111, %v942, 0.0
  %v953 = vsel %vm112, %v944, 0.0
  %v954 = vsel %vm113, %v945, 0.0
  %v955 = vrot.slane %v930, 1
  %v956 = vrot.slane %v931, 1
  %v957 = vsel %vm118, %v955, %v956
  %v958 = vrot.slane %v932, 1
  %v959 = vsel %vm118, %v956, %v958
  %v960 = vrot.slane %v933, 1
  %v961 = vsel %vm118, %v958, %v960
  %v967 = vsel %vm118, %v960, %v955
  %v968 = vsel %vm136, %v957, 0.0
  %v969 = vsel %vm137, %v959, 0.0
  %v970 = vsel %vm138, %v961, 0.0
  %v971 = vsel %vm139, %v967, 0.0
  %972 = vrot.lane.b32.xlu0 %v930, 32
  %v973 = vpop.permute.xlu0 %972
  %974 = vrot.lane.b32.xlu0 %v931, 32
  %v975 = vpop.permute.xlu0 %974
  %976 = vrot.lane.b32.xlu0 %v932, 32
  %v977 = vpop.permute.xlu0 %976
  %978 = vrot.lane.b32.xlu0 %v933, 32
  %v979 = vpop.permute.xlu0 %978
  %988 = vrot.lane.b32.xlu0 %v968, 64
  %v989 = vpop.permute.xlu0 %988
  %990 = vrot.lane.b32.xlu0 %v969, 64
  %v991 = vpop.permute.xlu0 %990
  %992 = vrot.lane.b32.xlu0 %v970, 64
  %v993 = vpop.permute.xlu0 %992
  %994 = vrot.lane.b32.xlu0 %v971, 64
  %v995 = vpop.permute.xlu0 %994
  %v1000 = vsel %vm172, %v951, %v973
  %v1001 = vsel %vm172, %v952, %v975
  %v1002 = vsel %vm172, %v953, %v977
  %v1003 = vsel %vm172, %v954, %v979
  %v1004 = vsel %vm177, %v1000, %v989
  %v1005 = vsel %vm177, %v1001, %v991
  %v1006 = vsel %vm177, %v1002, %v993
  %v1007 = vsel %vm177, %v1003, %v995
  %v1008 = vpack.c.bf16 %v1005, %v1004
  %v1009 = vpack.c.bf16 %v1007, %v1006
  %s1010 = scalar_lea.vmem %s1, 240
  %v1011 = vld [vmem:[%s1010] sm:$0xf]
  %v1012 = vld [vmem:[%s1010 + $0x4] sm:$0xf]
  %v1013 = vld [vmem:[%s1010 + $0x8] sm:$0xf]
  %v1014 = vld [vmem:[%s1010 + $0xc] sm:$0xf]
  %v1015 = vld [vmem:[%s1010 + $0x10] sm:$0xf]
  %v1016 = vld [vmem:[%s1010 + $0x14] sm:$0xf]
  %v1017 = vld [vmem:[%s1010 + $0x18] sm:$0xf]
  %v1018 = vld [vmem:[%s1010 + $0x1c] sm:$0xf]
  %v1019 = vld [vmem:[%s1010 + $0x20] sm:$0xf]
  %v1020 = vld [vmem:[%s1010 + $0x24] sm:$0xf]
  %v1021 = vld [vmem:[%s1010 + $0x28] sm:$0xf]
  %v1022 = vld [vmem:[%s1010 + $0x2c] sm:$0xf]
  %s1023 = scalar_lea.vmem %s2, 5
  %v1024 = vld [vmem:[%s1023] sm:$0x1]
  %v1026 = vperm.slane %v1024, 0
  %v1040 = vunpack.c.l.b16 %v1011
  %v1041 = vunpack.c.l.b16 %v1012
  %v1042 = vunpack.c.l.b16 %v1013
  %v1043 = vunpack.c.l.b16 %v1014
  %v1044 = vunpack.c.l.b16 %v1015
  %v1045 = vunpack.c.l.b16 %v1016
  %v1046 = vunpack.c.l.b16 %v1017
  %v1047 = vunpack.c.l.b16 %v1018
  %v1048 = vunpack.c.l.b16 %v1019
  %v1049 = vunpack.c.l.b16 %v1020
  %v1050 = vunpack.c.l.b16 %v1021
  %v1051 = vunpack.c.l.b16 %v1022
  %v1052 = vpack.c.b16 %v1041, %v1040
  %v1053 = vpack.c.b16 %v1043, %v1042
  %v1054 = vpack.c.b16 %v1045, %v1044
  %v1055 = vpack.c.b16 %v1047, %v1046
  %v1056 = vpack.c.b16 %v1049, %v1048
  %v1057 = vpack.c.b16 %v1051, %v1050
  %v1065 = vsel %vm236, %v1008, 0
  %v1068 = vsel %vm236, %v1009, 0
  %1070 = vmatpush.bf16.msra.mxu0 0
  %1071 = vmatpush.bf16.msra.mxu0 0
  %1072 = vmatpush.bf16.msra.mxu0 %v1057
  %1073 = vmatpush.bf16.msra.mxu0 %v1056
  %1074 = vmatpush.bf16.msra.mxu0 %v1055
  %1075 = vmatpush.bf16.msra.mxu0 %v1054
  %1076 = vmatpush.bf16.msra.mxu0 %v1053
  %1077 = vmatpush.bf16.msra.mxu0 %v1052
  %1078 = vmatmul.bf16.gmra.mxu0 %v1065
  %v1079 = vpop.f32.mrf.mxu0
  %v1080 = vadd.f32 %v1026, %v1079
  %v1081 = vpop.f32.mrf.mxu0
  %v1082 = vadd.f32 %v1026, %v1081
  %1083 = vmatmul.bf16.gmra.mxu0 %v1068
  %v1084 = vpop.f32.mrf.mxu0
  %v1085 = vadd.f32 %v1026, %v1084
  %v1086 = vpop.f32.mrf.mxu0
  %v1087 = vadd.f32 %v1026, %v1086
  %1088 = vdwg.mxu0
  %v1089 = vadd.f32 %v1080, %v763
  %v1090 = vadd.f32 %v1082, %v764
  %v1091 = vadd.f32 %v1085, %v765
  %v1092 = vadd.f32 %v1087, %v766
  %v1093 = vld [vmem:[%s3] sm:$0xff]
  %v1094 = vld [vmem:[%s3 + $0x8] sm:$0xff]
  %v1095 = vld [vmem:[%s3 + $0x10] sm:$0xff]
  %v1096 = vld [vmem:[%s3 + $0x18] sm:$0xff]
  %v1097 = vld [vmem:[%s3 + $0x20] sm:$0xff]
  %v1098 = vld [vmem:[%s3 + $0x28] sm:$0xff]
  %v1099 = vld [vmem:[%s3 + $0x30] sm:$0xff]
  %v1100 = vld [vmem:[%s3 + $0x38] sm:$0xff]
  %v1101 = vmul.f32 %v1089, %v1089
  %v1102 = vmul.f32 %v1090, %v1090
  %v1103 = vmul.f32 %v1091, %v1091
  %v1104 = vmul.f32 %v1092, %v1092
  %v1105 = vsel %vm172, %v1101, 0.0
  %1106 = vadd.xlane.f32.xlu0 %v1105
  %v1107 = vpop.xlane.xlu0 %1106
  %v1108 = vsel %vm172, %v1102, 0.0
  %1109 = vadd.xlane.f32.xlu0 %v1108
  %v1110 = vpop.xlane.xlu0 %1109
  %v1111 = vsel %vm172, %v1103, 0.0
  %1112 = vadd.xlane.f32.xlu0 %v1111
  %v1113 = vpop.xlane.xlu0 %1112
  %v1114 = vsel %vm172, %v1104, 0.0
  %1115 = vadd.xlane.f32.xlu0 %v1114
  %v1116 = vpop.xlane.xlu0 %1115
  %v1117 = vld [vmem:[%s4] sm:$0x1]
  %v1118 = vpack.c.bf16 %v1090, %v1089
  %v1119 = vpack.c.bf16 %v1092, %v1091
  %v1120 = vpack.c.bf16 %v1094, %v1093
  %v1121 = vpack.c.bf16 %v1096, %v1095
  %v1122 = vpack.c.bf16 %v1098, %v1097
  %v1123 = vpack.c.bf16 %v1100, %v1099
  %v1125 = vsel %vm172, %v1118, 0
  %v1128 = vsel %vm172, %v1119, 0
  %v1131 = vsel %vm172, %v1120, 0
  %v1134 = vsel %vm172, %v1121, 0
  %v1137 = vsel %vm172, %v1122, 0
  %v1140 = vsel %vm172, %v1123, 0
  %1142 = vmatpush.bf16.xpose.msra.mxu0 0
  %1143 = vmatpush.bf16.xpose.msra.mxu0 0
  %1144 = vmatpush.bf16.xpose.msra.mxu0 0
  %1145 = vmatpush.bf16.xpose.msra.mxu0 0
  %1146 = vmatpush.bf16.xpose.msra.mxu0 %v1140
  %1147 = vmatpush.bf16.xpose.msra.mxu0 %v1137
  %1148 = vmatpush.bf16.xpose.msra.mxu0 %v1134
  %1149 = vmatpush.bf16.xpose.msra.mxu0 %v1131
  %1150 = vmatmul.bf16.gmra.mxu0 %v1125
  %v1151 = vpop.f32.mrf.mxu0
  %v1152 = vadd.f32 0.0, %v1151
  %v1153 = vpop.f32.mrf.mxu0
  %v1154 = vadd.f32 0.0, %v1153
  %1155 = vmatmul.bf16.gmra.mxu0 %v1128
  %v1156 = vpop.f32.mrf.mxu0
  %v1157 = vadd.f32 0.0, %v1156
  %v1158 = vpop.f32.mrf.mxu0
  %v1159 = vadd.f32 0.0, %v1158
  %1160 = vdwg.mxu0
  %v1162 = vperm.slane %v1117, 0
  %v1164 = vadd.f32 %v1107, %v1162
  %v1165 = vadd.f32 %v1110, %v1162
  %v1166 = vadd.f32 %v1113, %v1162
  %v1167 = vadd.f32 %v1116, %v1162
  %v1168 = vmul.f32 %v1152, 2.0
  %v1169 = vmul.f32 %v1154, 2.0
  %v1170 = vmul.f32 %v1157, 2.0
  %v1171 = vmul.f32 %v1159, 2.0
  %v1172 = vsub.f32 %v1164, %v1168
  %v1173 = vsub.f32 %v1165, %v1169
  %v1174 = vsub.f32 %v1166, %v1170
  %v1175 = vsub.f32 %v1167, %v1171
  %v1176 = vsel %vm177, %v1172, inf
  %1177 = vmin.xlane.f32.xlu0 %v1176
  %v1178 = vpop.xlane.xlu0 %1177
  %v1179 = vsel %vm177, %v1173, inf
  %1180 = vmin.xlane.f32.xlu0 %v1179
  %v1181 = vpop.xlane.xlu0 %1180
  %v1182 = vsel %vm177, %v1174, inf
  %1183 = vmin.xlane.f32.xlu0 %v1182
  %v1184 = vpop.xlane.xlu0 %1183
  %v1185 = vsel %vm177, %v1175, inf
  %1186 = vmin.xlane.f32.xlu0 %v1185
  %v1187 = vpop.xlane.xlu0 %1186
  %v1188 = vlaneseq
  %v1189 = vand.u32 %v1188, 127
  %vm1190 = vcmp.le.f32.partialorder %v1172, %v1178
  %vm1191 = vcmp.le.f32.partialorder %v1173, %v1181
  %vm1192 = vcmp.le.f32.partialorder %v1174, %v1184
  %vm1193 = vcmp.le.f32.partialorder %v1175, %v1187
  %v1194 = vsel %vm1190, %v1189, 64
  %v1195 = vsel %vm1191, %v1189, 64
  %v1196 = vsel %vm1192, %v1189, 64
  %v1197 = vsel %vm1193, %v1189, 64
  %v1198 = vsel %vm177, %v1194, 2147483647
  %v1199 = vand.u32 %v1198, 65535
  %v1200 = vshra.s32 %v1198, 16
  %v1201 = vcvt.s32.f32 %v1199
  %v1202 = vcvt.s32.f32 %v1200
  %1203 = vmin.xlane.f32.xlu0 %v1202
  %v1204 = vpop.xlane.xlu0 %1203
  %vm1205 = vcmp.eq.f32.partialorder %v1202, %v1204
  %v1206 = vsel %vm1205, %v1201, inf
  %1207 = vmin.xlane.f32.xlu0 %v1206
  %v1208 = vpop.xlane.xlu0 %1207
  %v1209 = vcvt.f32.s32 %v1208
  %v1210 = vcvt.f32.s32 %v1204
  %v1211 = vshll.u32 %v1210, 16
  %v1212 = vadd.s32 %v1211, %v1209
  %v1213 = vsel %vm177, %v1195, 2147483647
  %v1214 = vand.u32 %v1213, 65535
  %v1215 = vshra.s32 %v1213, 16
  %v1216 = vcvt.s32.f32 %v1214
  %v1217 = vcvt.s32.f32 %v1215
  %1218 = vmin.xlane.f32.xlu0 %v1217
  %v1219 = vpop.xlane.xlu0 %1218
  %vm1220 = vcmp.eq.f32.partialorder %v1217, %v1219
  %v1221 = vsel %vm1220, %v1216, inf
  %1222 = vmin.xlane.f32.xlu0 %v1221
  %v1223 = vpop.xlane.xlu0 %1222
  %v1224 = vcvt.f32.s32 %v1223
  %v1225 = vcvt.f32.s32 %v1219
  %v1226 = vshll.u32 %v1225, 16
  %v1227 = vadd.s32 %v1226, %v1224
  %v1228 = vsel %vm177, %v1196, 2147483647
  %v1229 = vand.u32 %v1228, 65535
  %v1230 = vshra.s32 %v1228, 16
  %v1231 = vcvt.s32.f32 %v1229
  %v1232 = vcvt.s32.f32 %v1230
  %1233 = vmin.xlane.f32.xlu0 %v1232
  %v1234 = vpop.xlane.xlu0 %1233
  %vm1235 = vcmp.eq.f32.partialorder %v1232, %v1234
  %v1236 = vsel %vm1235, %v1231, inf
  %1237 = vmin.xlane.f32.xlu0 %v1236
  %v1238 = vpop.xlane.xlu0 %1237
  %v1239 = vcvt.f32.s32 %v1238
  %v1240 = vcvt.f32.s32 %v1234
  %v1241 = vshll.u32 %v1240, 16
  %v1242 = vadd.s32 %v1241, %v1239
  %v1243 = vsel %vm177, %v1197, 2147483647
  %v1244 = vand.u32 %v1243, 65535
  %v1245 = vshra.s32 %v1243, 16
  %v1246 = vcvt.s32.f32 %v1244
  %v1247 = vcvt.s32.f32 %v1245
  %1248 = vmin.xlane.f32.xlu0 %v1247
  %v1249 = vpop.xlane.xlu0 %1248
  %vm1250 = vcmp.eq.f32.partialorder %v1247, %v1249
  %v1251 = vsel %vm1250, %v1246, inf
  %1252 = vmin.xlane.f32.xlu0 %v1251
  %v1253 = vpop.xlane.xlu0 %1252
  %v1254 = vcvt.f32.s32 %v1253
  %v1255 = vcvt.f32.s32 %v1249
  %v1256 = vshll.u32 %v1255, 16
  %v1257 = vadd.s32 %v1256, %v1254
  %vm1258 = vcmp.eq.s32.totalorder %v1189, %v1212
  %vm1259 = vcmp.eq.s32.totalorder %v1189, %v1227
  %vm1260 = vcmp.eq.s32.totalorder %v1189, %v1242
  %vm1261 = vcmp.eq.s32.totalorder %v1189, %v1257
  %v1262 = vsel %vm1258, 1, 0
  %v1263 = vsel %vm1259, 1, 0
  %v1264 = vsel %vm1260, 1, 0
  %v1265 = vsel %vm1261, 1, 0
  %v1266 = vcvt.s32.f32 %v1262
  %v1267 = vcvt.s32.f32 %v1263
  %v1268 = vcvt.s32.f32 %v1264
  %v1269 = vcvt.s32.f32 %v1265
  %v1271 = vsel %vm177, %v1266, 0
  %v1274 = vsel %vm177, %v1267, 0
  %v1277 = vsel %vm177, %v1268, 0
  %v1280 = vsel %vm177, %v1269, 0
  %1282 = vmatpush.msra.mxu0 0.0
  %1283 = vmatpush.msra.mxu0 0.0
  %1284 = vmatpush.msra.mxu0 0.0
  %1285 = vmatpush.msra.mxu0 0.0
  %1286 = vmatpush.msra.mxu0 0.0
  %1287 = vmatpush.msra.mxu0 0.0
  %1288 = vmatpush.msra.mxu0 0.0
  %1289 = vmatpush.msra.mxu0 0.0
  %1290 = vmatpush.msra.mxu0 %v1100
  %1291 = vmatpush.msra.mxu0 %v1099
  %1292 = vmatpush.msra.mxu0 %v1098
  %1293 = vmatpush.msra.mxu0 %v1097
  %1294 = vmatpush.msra.mxu0 %v1096
  %1295 = vmatpush.msra.mxu0 %v1095
  %1296 = vmatpush.msra.mxu0 %v1094
  %1297 = vmatpush.msra.mxu0 %v1093
  %1298 = vmatmul.f32.gmra.mxu0 %v1271
  %v1299 = vpop.f32.mrf.mxu0
  %v1300 = vadd.f32 0.0, %v1299
  %1301 = vmatmul.f32.gmra.mxu0 %v1274
  %v1302 = vpop.f32.mrf.mxu0
  %v1303 = vadd.f32 0.0, %v1302
  %1304 = vmatmul.f32.gmra.mxu0 %v1277
  %v1305 = vpop.f32.mrf.mxu0
  %v1306 = vadd.f32 0.0, %v1305
  %1307 = vmatmul.f32.gmra.mxu0 %v1280
  %v1308 = vpop.f32.mrf.mxu0
  %v1309 = vadd.f32 0.0, %v1308
  %1310 = vdwg.mxu0
  %v1311 = vsub.f32 %v1300, %v1089
  %v1312 = vsub.f32 %v1303, %v1090
  %v1313 = vsub.f32 %v1306, %v1091
  %v1314 = vsub.f32 %v1309, %v1092
  %v1315 = vmul.f32 %v1311, %v1311
  %v1316 = vmul.f32 %v1312, %v1312
  %v1317 = vmul.f32 %v1313, %v1313
  %v1318 = vmul.f32 %v1314, %v1314
  %v1319 = vsel %vm172, %v1315, 0.0
  %1320 = vadd.xlane.f32.xlu0 %v1319
  %v1321 = vpop.xlane.xlu0 %1320
  %v1322 = vsel %vm172, %v1316, 0.0
  %1323 = vadd.xlane.f32.xlu0 %v1322
  %v1324 = vpop.xlane.xlu0 %1323
  %v1325 = vsel %vm172, %v1317, 0.0
  %1326 = vadd.xlane.f32.xlu0 %v1325
  %v1327 = vpop.xlane.xlu0 %1326
  %v1328 = vsel %vm172, %v1318, 0.0
  %1329 = vadd.xlane.f32.xlu0 %v1328
  %v1330 = vpop.xlane.xlu0 %1329
  %v1331 = vadd.f32 %v1321, %v1324
  %v1332 = vadd.f32 %v1331, %v1327
  %v1333 = vadd.f32 %v1332, %v1330
  %v1334 = vrot.slane %v1333, 4
  %v1335 = vadd.f32 %v1333, %v1334
  %v1336 = vrot.slane %v1335, 2
  %v1337 = vadd.f32 %v1335, %v1336
  %v1338 = vrot.slane %v1337, 1
  %v1339 = vadd.f32 %v1337, %v1338
  %v1340 = vsel %vm177, %v1266, 0.0
  %v1341 = vsel %vm177, %v1267, 0.0
  %v1342 = vadd.f32 %v1340, %v1341
  %v1343 = vsel %vm177, %v1268, 0.0
  %v1344 = vadd.f32 %v1342, %v1343
  %v1345 = vsel %vm177, %v1269, 0.0
  %v1346 = vadd.f32 %v1344, %v1345
  %v1347 = vrot.slane %v1346, 4
  %v1348 = vadd.f32 %v1346, %v1347
  %v1349 = vrot.slane %v1348, 2
  %v1350 = vadd.f32 %v1348, %v1349
  %v1351 = vrot.slane %v1350, 1
  %v1352 = vadd.f32 %v1350, %v1351
  %v1354 = vrot.slane %v1309, 7
  %v1359 = vrot.slane %v1300, 7
  %v1360 = vrot.slane %v1303, 7
  %v1361 = vsel %vm94, %v1359, %v1360
  %v1362 = vrot.slane %v1306, 7
  %v1363 = vsel %vm94, %v1360, %v1362
  %v1364 = vsel %vm94, %v1362, %v1354
  %v1369 = vsel %vm94, %v1354, %v1359
  %v1370 = vsel %vm110, %v1369, 0.0
  %v1371 = vsel %vm111, %v1361, 0.0
  %v1372 = vsel %vm112, %v1363, 0.0
  %v1373 = vsel %vm113, %v1364, 0.0
  %v1374 = vrot.slane %v1300, 1
  %v1375 = vrot.slane %v1303, 1
  %v1376 = vsel %vm118, %v1374, %v1375
  %v1377 = vrot.slane %v1306, 1
  %v1378 = vsel %vm118, %v1375, %v1377
  %v1379 = vrot.slane %v1309, 1
  %v1380 = vsel %vm118, %v1377, %v1379
  %v1386 = vsel %vm118, %v1379, %v1374
  %v1387 = vsel %vm136, %v1376, 0.0
  %v1388 = vsel %vm137, %v1378, 0.0
  %v1389 = vsel %vm138, %v1380, 0.0
  %v1390 = vsel %vm139, %v1386, 0.0
  %1391 = vrot.lane.b32.xlu0 %v1300, 32
  %v1392 = vpop.permute.xlu0 %1391
  %1393 = vrot.lane.b32.xlu0 %v1303, 32
  %v1394 = vpop.permute.xlu0 %1393
  %1395 = vrot.lane.b32.xlu0 %v1306, 32
  %v1396 = vpop.permute.xlu0 %1395
  %1397 = vrot.lane.b32.xlu0 %v1309, 32
  %v1398 = vpop.permute.xlu0 %1397
  %1407 = vrot.lane.b32.xlu0 %v1387, 64
  %v1408 = vpop.permute.xlu0 %1407
  %1409 = vrot.lane.b32.xlu0 %v1388, 64
  %v1410 = vpop.permute.xlu0 %1409
  %1411 = vrot.lane.b32.xlu0 %v1389, 64
  %v1412 = vpop.permute.xlu0 %1411
  %1413 = vrot.lane.b32.xlu0 %v1390, 64
  %v1414 = vpop.permute.xlu0 %1413
  %v1419 = vsel %vm172, %v1370, %v1392
  %v1420 = vsel %vm172, %v1371, %v1394
  %v1421 = vsel %vm172, %v1372, %v1396
  %v1422 = vsel %vm172, %v1373, %v1398
  %v1423 = vsel %vm177, %v1419, %v1408
  %v1424 = vsel %vm177, %v1420, %v1410
  %v1425 = vsel %vm177, %v1421, %v1412
  %v1426 = vsel %vm177, %v1422, %v1414
  %v1427 = vpack.c.bf16 %v1424, %v1423
  %v1428 = vpack.c.bf16 %v1426, %v1425
  %s1429 = scalar_lea.vmem %s1, 288
  %v1430 = vld [vmem:[%s1429] sm:$0xf]
  %v1431 = vld [vmem:[%s1429 + $0x4] sm:$0xf]
  %v1432 = vld [vmem:[%s1429 + $0x8] sm:$0xf]
  %v1433 = vld [vmem:[%s1429 + $0xc] sm:$0xf]
  %v1434 = vld [vmem:[%s1429 + $0x10] sm:$0xf]
  %v1435 = vld [vmem:[%s1429 + $0x14] sm:$0xf]
  %v1436 = vld [vmem:[%s1429 + $0x18] sm:$0xf]
  %v1437 = vld [vmem:[%s1429 + $0x1c] sm:$0xf]
  %v1438 = vld [vmem:[%s1429 + $0x20] sm:$0xf]
  %v1439 = vld [vmem:[%s1429 + $0x24] sm:$0xf]
  %v1440 = vld [vmem:[%s1429 + $0x28] sm:$0xf]
  %v1441 = vld [vmem:[%s1429 + $0x2c] sm:$0xf]
  %s1442 = scalar_lea.vmem %s2, 6
  %v1443 = vld [vmem:[%s1442] sm:$0x1]
  %v1445 = vperm.slane %v1443, 0
  %v1459 = vunpack.c.l.b16 %v1430
  %v1460 = vunpack.c.l.b16 %v1431
  %v1461 = vunpack.c.l.b16 %v1432
  %v1462 = vunpack.c.l.b16 %v1433
  %v1463 = vunpack.c.l.b16 %v1434
  %v1464 = vunpack.c.l.b16 %v1435
  %v1465 = vunpack.c.l.b16 %v1436
  %v1466 = vunpack.c.l.b16 %v1437
  %v1467 = vunpack.c.l.b16 %v1438
  %v1468 = vunpack.c.l.b16 %v1439
  %v1469 = vunpack.c.l.b16 %v1440
  %v1470 = vunpack.c.l.b16 %v1441
  %v1471 = vpack.c.b16 %v1460, %v1459
  %v1472 = vpack.c.b16 %v1462, %v1461
  %v1473 = vpack.c.b16 %v1464, %v1463
  %v1474 = vpack.c.b16 %v1466, %v1465
  %v1475 = vpack.c.b16 %v1468, %v1467
  %v1476 = vpack.c.b16 %v1470, %v1469
  %v1484 = vsel %vm236, %v1427, 0
  %v1487 = vsel %vm236, %v1428, 0
  %1489 = vmatpush.bf16.msra.mxu0 0
  %1490 = vmatpush.bf16.msra.mxu0 0
  %1491 = vmatpush.bf16.msra.mxu0 %v1476
  %1492 = vmatpush.bf16.msra.mxu0 %v1475
  %1493 = vmatpush.bf16.msra.mxu0 %v1474
  %1494 = vmatpush.bf16.msra.mxu0 %v1473
  %1495 = vmatpush.bf16.msra.mxu0 %v1472
  %1496 = vmatpush.bf16.msra.mxu0 %v1471
  %1497 = vmatmul.bf16.gmra.mxu0 %v1484
  %v1498 = vpop.f32.mrf.mxu0
  %v1499 = vadd.f32 %v1445, %v1498
  %v1500 = vpop.f32.mrf.mxu0
  %v1501 = vadd.f32 %v1445, %v1500
  %1502 = vmatmul.bf16.gmra.mxu0 %v1487
  %v1503 = vpop.f32.mrf.mxu0
  %v1504 = vadd.f32 %v1445, %v1503
  %v1505 = vpop.f32.mrf.mxu0
  %v1506 = vadd.f32 %v1445, %v1505
  %1507 = vdwg.mxu0
  %vm1508 = vcmp.ge.f32.partialorder %v1499, 0.0
  %vm1509 = vcmp.ge.f32.partialorder %v1501, 0.0
  %vm1510 = vcmp.ge.f32.partialorder %v1504, 0.0
  %vm1511 = vcmp.ge.f32.partialorder %v1506, 0.0
  %v1512 = vmul.f32 %v1499, 0.2
  %v1513 = vmul.f32 %v1501, 0.2
  %v1514 = vmul.f32 %v1504, 0.2
  %v1515 = vmul.f32 %v1506, 0.2
  %v1516 = vsel %vm1508, %v1499, %v1512
  %v1517 = vsel %vm1509, %v1501, %v1513
  %v1518 = vsel %vm1510, %v1504, %v1514
  %v1519 = vsel %vm1511, %v1506, %v1515
  %v1521 = vrot.slane %v1519, 7
  %v1526 = vrot.slane %v1516, 7
  %v1527 = vrot.slane %v1517, 7
  %v1528 = vsel %vm94, %v1526, %v1527
  %v1529 = vrot.slane %v1518, 7
  %v1530 = vsel %vm94, %v1527, %v1529
  %v1531 = vsel %vm94, %v1529, %v1521
  %v1536 = vsel %vm94, %v1521, %v1526
  %v1537 = vsel %vm110, %v1536, 0.0
  %v1538 = vsel %vm111, %v1528, 0.0
  %v1539 = vsel %vm112, %v1530, 0.0
  %v1540 = vsel %vm113, %v1531, 0.0
  %v1541 = vrot.slane %v1516, 1
  %v1542 = vrot.slane %v1517, 1
  %v1543 = vsel %vm118, %v1541, %v1542
  %v1544 = vrot.slane %v1518, 1
  %v1545 = vsel %vm118, %v1542, %v1544
  %v1546 = vrot.slane %v1519, 1
  %v1547 = vsel %vm118, %v1544, %v1546
  %v1553 = vsel %vm118, %v1546, %v1541
  %v1554 = vsel %vm136, %v1543, 0.0
  %v1555 = vsel %vm137, %v1545, 0.0
  %v1556 = vsel %vm138, %v1547, 0.0
  %v1557 = vsel %vm139, %v1553, 0.0
  %1558 = vrot.lane.b32.xlu0 %v1516, 32
  %v1559 = vpop.permute.xlu0 %1558
  %1560 = vrot.lane.b32.xlu0 %v1517, 32
  %v1561 = vpop.permute.xlu0 %1560
  %1562 = vrot.lane.b32.xlu0 %v1518, 32
  %v1563 = vpop.permute.xlu0 %1562
  %1564 = vrot.lane.b32.xlu0 %v1519, 32
  %v1565 = vpop.permute.xlu0 %1564
  %1574 = vrot.lane.b32.xlu0 %v1554, 64
  %v1575 = vpop.permute.xlu0 %1574
  %1576 = vrot.lane.b32.xlu0 %v1555, 64
  %v1577 = vpop.permute.xlu0 %1576
  %1578 = vrot.lane.b32.xlu0 %v1556, 64
  %v1579 = vpop.permute.xlu0 %1578
  %1580 = vrot.lane.b32.xlu0 %v1557, 64
  %v1581 = vpop.permute.xlu0 %1580
  %v1586 = vsel %vm172, %v1537, %v1559
  %v1587 = vsel %vm172, %v1538, %v1561
  %v1588 = vsel %vm172, %v1539, %v1563
  %v1589 = vsel %vm172, %v1540, %v1565
  %v1590 = vsel %vm177, %v1586, %v1575
  %v1591 = vsel %vm177, %v1587, %v1577
  %v1592 = vsel %vm177, %v1588, %v1579
  %v1593 = vsel %vm177, %v1589, %v1581
  %v1594 = vpack.c.bf16 %v1591, %v1590
  %v1595 = vpack.c.bf16 %v1593, %v1592
  %s1596 = scalar_lea.vmem %s1, 336
  %v1597 = vld [vmem:[%s1596] sm:$0xf]
  %v1598 = vld [vmem:[%s1596 + $0x4] sm:$0xf]
  %v1599 = vld [vmem:[%s1596 + $0x8] sm:$0xf]
  %v1600 = vld [vmem:[%s1596 + $0xc] sm:$0xf]
  %v1601 = vld [vmem:[%s1596 + $0x10] sm:$0xf]
  %v1602 = vld [vmem:[%s1596 + $0x14] sm:$0xf]
  %v1603 = vld [vmem:[%s1596 + $0x18] sm:$0xf]
  %v1604 = vld [vmem:[%s1596 + $0x1c] sm:$0xf]
  %v1605 = vld [vmem:[%s1596 + $0x20] sm:$0xf]
  %v1606 = vld [vmem:[%s1596 + $0x24] sm:$0xf]
  %v1607 = vld [vmem:[%s1596 + $0x28] sm:$0xf]
  %v1608 = vld [vmem:[%s1596 + $0x2c] sm:$0xf]
  %s1609 = scalar_lea.vmem %s2, 7
  %v1610 = vld [vmem:[%s1609] sm:$0x1]
  %v1612 = vperm.slane %v1610, 0
  %v1626 = vunpack.c.l.b16 %v1597
  %v1627 = vunpack.c.l.b16 %v1598
  %v1628 = vunpack.c.l.b16 %v1599
  %v1629 = vunpack.c.l.b16 %v1600
  %v1630 = vunpack.c.l.b16 %v1601
  %v1631 = vunpack.c.l.b16 %v1602
  %v1632 = vunpack.c.l.b16 %v1603
  %v1633 = vunpack.c.l.b16 %v1604
  %v1634 = vunpack.c.l.b16 %v1605
  %v1635 = vunpack.c.l.b16 %v1606
  %v1636 = vunpack.c.l.b16 %v1607
  %v1637 = vunpack.c.l.b16 %v1608
  %v1638 = vpack.c.b16 %v1627, %v1626
  %v1639 = vpack.c.b16 %v1629, %v1628
  %v1640 = vpack.c.b16 %v1631, %v1630
  %v1641 = vpack.c.b16 %v1633, %v1632
  %v1642 = vpack.c.b16 %v1635, %v1634
  %v1643 = vpack.c.b16 %v1637, %v1636
  %v1651 = vsel %vm236, %v1594, 0
  %v1654 = vsel %vm236, %v1595, 0
  %1656 = vmatpush.bf16.msra.mxu0 0
  %1657 = vmatpush.bf16.msra.mxu0 0
  %1658 = vmatpush.bf16.msra.mxu0 %v1643
  %1659 = vmatpush.bf16.msra.mxu0 %v1642
  %1660 = vmatpush.bf16.msra.mxu0 %v1641
  %1661 = vmatpush.bf16.msra.mxu0 %v1640
  %1662 = vmatpush.bf16.msra.mxu0 %v1639
  %1663 = vmatpush.bf16.msra.mxu0 %v1638
  %1664 = vmatmul.bf16.gmra.mxu0 %v1651
  %v1665 = vpop.f32.mrf.mxu0
  %v1666 = vadd.f32 %v1612, %v1665
  %v1667 = vpop.f32.mrf.mxu0
  %v1668 = vadd.f32 %v1612, %v1667
  %1669 = vmatmul.bf16.gmra.mxu0 %v1654
  %v1670 = vpop.f32.mrf.mxu0
  %v1671 = vadd.f32 %v1612, %v1670
  %v1672 = vpop.f32.mrf.mxu0
  %v1673 = vadd.f32 %v1612, %v1672
  %1674 = vdwg.mxu0
  %v1675 = vadd.f32 %v1666, %v1300
  %v1676 = vadd.f32 %v1668, %v1303
  %v1677 = vadd.f32 %v1671, %v1306
  %v1678 = vadd.f32 %v1673, %v1309
  %v1680 = vrot.slane %v1678, 7
  %v1685 = vrot.slane %v1675, 7
  %v1686 = vrot.slane %v1676, 7
  %v1687 = vsel %vm94, %v1685, %v1686
  %v1688 = vrot.slane %v1677, 7
  %v1689 = vsel %vm94, %v1686, %v1688
  %v1690 = vsel %vm94, %v1688, %v1680
  %v1695 = vsel %vm94, %v1680, %v1685
  %v1696 = vsel %vm110, %v1695, 0.0
  %v1697 = vsel %vm111, %v1687, 0.0
  %v1698 = vsel %vm112, %v1689, 0.0
  %v1699 = vsel %vm113, %v1690, 0.0
  %v1700 = vrot.slane %v1675, 1
  %v1701 = vrot.slane %v1676, 1
  %v1702 = vsel %vm118, %v1700, %v1701
  %v1703 = vrot.slane %v1677, 1
  %v1704 = vsel %vm118, %v1701, %v1703
  %v1705 = vrot.slane %v1678, 1
  %v1706 = vsel %vm118, %v1703, %v1705
  %v1712 = vsel %vm118, %v1705, %v1700
  %v1713 = vsel %vm136, %v1702, 0.0
  %v1714 = vsel %vm137, %v1704, 0.0
  %v1715 = vsel %vm138, %v1706, 0.0
  %v1716 = vsel %vm139, %v1712, 0.0
  %1717 = vrot.lane.b32.xlu0 %v1675, 32
  %v1718 = vpop.permute.xlu0 %1717
  %1719 = vrot.lane.b32.xlu0 %v1676, 32
  %v1720 = vpop.permute.xlu0 %1719
  %1721 = vrot.lane.b32.xlu0 %v1677, 32
  %v1722 = vpop.permute.xlu0 %1721
  %1723 = vrot.lane.b32.xlu0 %v1678, 32
  %v1724 = vpop.permute.xlu0 %1723
  %1733 = vrot.lane.b32.xlu0 %v1713, 64
  %v1734 = vpop.permute.xlu0 %1733
  %1735 = vrot.lane.b32.xlu0 %v1714, 64
  %v1736 = vpop.permute.xlu0 %1735
  %1737 = vrot.lane.b32.xlu0 %v1715, 64
  %v1738 = vpop.permute.xlu0 %1737
  %1739 = vrot.lane.b32.xlu0 %v1716, 64
  %v1740 = vpop.permute.xlu0 %1739
  %v1745 = vsel %vm172, %v1696, %v1718
  %v1746 = vsel %vm172, %v1697, %v1720
  %v1747 = vsel %vm172, %v1698, %v1722
  %v1748 = vsel %vm172, %v1699, %v1724
  %v1749 = vsel %vm177, %v1745, %v1734
  %v1750 = vsel %vm177, %v1746, %v1736
  %v1751 = vsel %vm177, %v1747, %v1738
  %v1752 = vsel %vm177, %v1748, %v1740
  %v1753 = vpack.c.bf16 %v1750, %v1749
  %v1754 = vpack.c.bf16 %v1752, %v1751
  %s1755 = scalar_lea.vmem %s1, 384
  %v1756 = vld [vmem:[%s1755] sm:$0xf]
  %v1757 = vld [vmem:[%s1755 + $0x4] sm:$0xf]
  %v1758 = vld [vmem:[%s1755 + $0x8] sm:$0xf]
  %v1759 = vld [vmem:[%s1755 + $0xc] sm:$0xf]
  %v1760 = vld [vmem:[%s1755 + $0x10] sm:$0xf]
  %v1761 = vld [vmem:[%s1755 + $0x14] sm:$0xf]
  %v1762 = vld [vmem:[%s1755 + $0x18] sm:$0xf]
  %v1763 = vld [vmem:[%s1755 + $0x1c] sm:$0xf]
  %v1764 = vld [vmem:[%s1755 + $0x20] sm:$0xf]
  %v1765 = vld [vmem:[%s1755 + $0x24] sm:$0xf]
  %v1766 = vld [vmem:[%s1755 + $0x28] sm:$0xf]
  %v1767 = vld [vmem:[%s1755 + $0x2c] sm:$0xf]
  %s1768 = scalar_lea.vmem %s2, 8
  %v1769 = vld [vmem:[%s1768] sm:$0x1]
  %v1771 = vperm.slane %v1769, 0
  %v1785 = vunpack.c.l.b16 %v1756
  %v1786 = vunpack.c.l.b16 %v1757
  %v1787 = vunpack.c.l.b16 %v1758
  %v1788 = vunpack.c.l.b16 %v1759
  %v1789 = vunpack.c.l.b16 %v1760
  %v1790 = vunpack.c.l.b16 %v1761
  %v1791 = vunpack.c.l.b16 %v1762
  %v1792 = vunpack.c.l.b16 %v1763
  %v1793 = vunpack.c.l.b16 %v1764
  %v1794 = vunpack.c.l.b16 %v1765
  %v1795 = vunpack.c.l.b16 %v1766
  %v1796 = vunpack.c.l.b16 %v1767
  %v1797 = vpack.c.b16 %v1786, %v1785
  %v1798 = vpack.c.b16 %v1788, %v1787
  %v1799 = vpack.c.b16 %v1790, %v1789
  %v1800 = vpack.c.b16 %v1792, %v1791
  %v1801 = vpack.c.b16 %v1794, %v1793
  %v1802 = vpack.c.b16 %v1796, %v1795
  %v1810 = vsel %vm236, %v1753, 0
  %v1813 = vsel %vm236, %v1754, 0
  %1815 = vmatpush.bf16.msra.mxu0 0
  %1816 = vmatpush.bf16.msra.mxu0 0
  %1817 = vmatpush.bf16.msra.mxu0 %v1802
  %1818 = vmatpush.bf16.msra.mxu0 %v1801
  %1819 = vmatpush.bf16.msra.mxu0 %v1800
  %1820 = vmatpush.bf16.msra.mxu0 %v1799
  %1821 = vmatpush.bf16.msra.mxu0 %v1798
  %1822 = vmatpush.bf16.msra.mxu0 %v1797
  %1823 = vmatmul.bf16.gmra.mxu0 %v1810
  %v1824 = vpop.f32.mrf.mxu0
  %v1825 = vadd.f32 %v1771, %v1824
  %v1826 = vpop.f32.mrf.mxu0
  %v1827 = vadd.f32 %v1771, %v1826
  %1828 = vmatmul.bf16.gmra.mxu0 %v1813
  %v1829 = vpop.f32.mrf.mxu0
  %v1830 = vadd.f32 %v1771, %v1829
  %v1831 = vpop.f32.mrf.mxu0
  %v1832 = vadd.f32 %v1771, %v1831
  %1833 = vdwg.mxu0
  %vm1834 = vcmp.ge.f32.partialorder %v1825, 0.0
  %vm1835 = vcmp.ge.f32.partialorder %v1827, 0.0
  %vm1836 = vcmp.ge.f32.partialorder %v1830, 0.0
  %vm1837 = vcmp.ge.f32.partialorder %v1832, 0.0
  %v1838 = vmul.f32 %v1825, 0.2
  %v1839 = vmul.f32 %v1827, 0.2
  %v1840 = vmul.f32 %v1830, 0.2
  %v1841 = vmul.f32 %v1832, 0.2
  %v1842 = vsel %vm1834, %v1825, %v1838
  %v1843 = vsel %vm1835, %v1827, %v1839
  %v1844 = vsel %vm1836, %v1830, %v1840
  %v1845 = vsel %vm1837, %v1832, %v1841
  %v1847 = vrot.slane %v1845, 7
  %v1852 = vrot.slane %v1842, 7
  %v1853 = vrot.slane %v1843, 7
  %v1854 = vsel %vm94, %v1852, %v1853
  %v1855 = vrot.slane %v1844, 7
  %v1856 = vsel %vm94, %v1853, %v1855
  %v1857 = vsel %vm94, %v1855, %v1847
  %v1862 = vsel %vm94, %v1847, %v1852
  %v1863 = vsel %vm110, %v1862, 0.0
  %v1864 = vsel %vm111, %v1854, 0.0
  %v1865 = vsel %vm112, %v1856, 0.0
  %v1866 = vsel %vm113, %v1857, 0.0
  %v1867 = vrot.slane %v1842, 1
  %v1868 = vrot.slane %v1843, 1
  %v1869 = vsel %vm118, %v1867, %v1868
  %v1870 = vrot.slane %v1844, 1
  %v1871 = vsel %vm118, %v1868, %v1870
  %v1872 = vrot.slane %v1845, 1
  %v1873 = vsel %vm118, %v1870, %v1872
  %v1879 = vsel %vm118, %v1872, %v1867
  %v1880 = vsel %vm136, %v1869, 0.0
  %v1881 = vsel %vm137, %v1871, 0.0
  %v1882 = vsel %vm138, %v1873, 0.0
  %v1883 = vsel %vm139, %v1879, 0.0
  %1884 = vrot.lane.b32.xlu0 %v1842, 32
  %v1885 = vpop.permute.xlu0 %1884
  %1886 = vrot.lane.b32.xlu0 %v1843, 32
  %v1887 = vpop.permute.xlu0 %1886
  %1888 = vrot.lane.b32.xlu0 %v1844, 32
  %v1889 = vpop.permute.xlu0 %1888
  %1890 = vrot.lane.b32.xlu0 %v1845, 32
  %v1891 = vpop.permute.xlu0 %1890
  %1900 = vrot.lane.b32.xlu0 %v1880, 64
  %v1901 = vpop.permute.xlu0 %1900
  %1902 = vrot.lane.b32.xlu0 %v1881, 64
  %v1903 = vpop.permute.xlu0 %1902
  %1904 = vrot.lane.b32.xlu0 %v1882, 64
  %v1905 = vpop.permute.xlu0 %1904
  %1906 = vrot.lane.b32.xlu0 %v1883, 64
  %v1907 = vpop.permute.xlu0 %1906
  %v1912 = vsel %vm172, %v1863, %v1885
  %v1913 = vsel %vm172, %v1864, %v1887
  %v1914 = vsel %vm172, %v1865, %v1889
  %v1915 = vsel %vm172, %v1866, %v1891
  %v1916 = vsel %vm177, %v1912, %v1901
  %v1917 = vsel %vm177, %v1913, %v1903
  %v1918 = vsel %vm177, %v1914, %v1905
  %v1919 = vsel %vm177, %v1915, %v1907
  %v1920 = vpack.c.bf16 %v1917, %v1916
  %v1921 = vpack.c.bf16 %v1919, %v1918
  %s1922 = scalar_lea.vmem %s1, 432
  %v1923 = vld [vmem:[%s1922] sm:$0xf]
  %v1924 = vld [vmem:[%s1922 + $0x4] sm:$0xf]
  %v1925 = vld [vmem:[%s1922 + $0x8] sm:$0xf]
  %v1926 = vld [vmem:[%s1922 + $0xc] sm:$0xf]
  %v1927 = vld [vmem:[%s1922 + $0x10] sm:$0xf]
  %v1928 = vld [vmem:[%s1922 + $0x14] sm:$0xf]
  %v1929 = vld [vmem:[%s1922 + $0x18] sm:$0xf]
  %v1930 = vld [vmem:[%s1922 + $0x1c] sm:$0xf]
  %v1931 = vld [vmem:[%s1922 + $0x20] sm:$0xf]
  %v1932 = vld [vmem:[%s1922 + $0x24] sm:$0xf]
  %v1933 = vld [vmem:[%s1922 + $0x28] sm:$0xf]
  %v1934 = vld [vmem:[%s1922 + $0x2c] sm:$0xf]
  %s1935 = scalar_lea.vmem %s2, 9
  %v1936 = vld [vmem:[%s1935] sm:$0x1]
  %v1938 = vperm.slane %v1936, 0
  %v1952 = vunpack.c.l.b16 %v1923
  %v1953 = vunpack.c.l.b16 %v1924
  %v1954 = vunpack.c.l.b16 %v1925
  %v1955 = vunpack.c.l.b16 %v1926
  %v1956 = vunpack.c.l.b16 %v1927
  %v1957 = vunpack.c.l.b16 %v1928
  %v1958 = vunpack.c.l.b16 %v1929
  %v1959 = vunpack.c.l.b16 %v1930
  %v1960 = vunpack.c.l.b16 %v1931
  %v1961 = vunpack.c.l.b16 %v1932
  %v1962 = vunpack.c.l.b16 %v1933
  %v1963 = vunpack.c.l.b16 %v1934
  %v1964 = vpack.c.b16 %v1953, %v1952
  %v1965 = vpack.c.b16 %v1955, %v1954
  %v1966 = vpack.c.b16 %v1957, %v1956
  %v1967 = vpack.c.b16 %v1959, %v1958
  %v1968 = vpack.c.b16 %v1961, %v1960
  %v1969 = vpack.c.b16 %v1963, %v1962
  %v1977 = vsel %vm236, %v1920, 0
  %v1980 = vsel %vm236, %v1921, 0
  %1982 = vmatpush.bf16.msra.mxu0 0
  %1983 = vmatpush.bf16.msra.mxu0 0
  %1984 = vmatpush.bf16.msra.mxu0 %v1969
  %1985 = vmatpush.bf16.msra.mxu0 %v1968
  %1986 = vmatpush.bf16.msra.mxu0 %v1967
  %1987 = vmatpush.bf16.msra.mxu0 %v1966
  %1988 = vmatpush.bf16.msra.mxu0 %v1965
  %1989 = vmatpush.bf16.msra.mxu0 %v1964
  %1990 = vmatmul.bf16.gmra.mxu0 %v1977
  %v1991 = vpop.f32.mrf.mxu0
  %v1992 = vadd.f32 %v1938, %v1991
  %v1993 = vpop.f32.mrf.mxu0
  %v1994 = vadd.f32 %v1938, %v1993
  %1995 = vmatmul.bf16.gmra.mxu0 %v1980
  %v1996 = vpop.f32.mrf.mxu0
  %v1997 = vadd.f32 %v1938, %v1996
  %v1998 = vpop.f32.mrf.mxu0
  %v1999 = vadd.f32 %v1938, %v1998
  %2000 = vdwg.mxu0
  %v2001 = vadd.f32 %v1992, %v1675
  %v2002 = vadd.f32 %v1994, %v1676
  %v2003 = vadd.f32 %v1997, %v1677
  %v2004 = vadd.f32 %v1999, %v1678
  %v2006 = vrot.slane %v2004, 7
  %v2011 = vrot.slane %v2001, 7
  %v2012 = vrot.slane %v2002, 7
  %v2013 = vsel %vm94, %v2011, %v2012
  %v2014 = vrot.slane %v2003, 7
  %v2015 = vsel %vm94, %v2012, %v2014
  %v2016 = vsel %vm94, %v2014, %v2006
  %v2021 = vsel %vm94, %v2006, %v2011
  %v2022 = vsel %vm110, %v2021, 0.0
  %v2023 = vsel %vm111, %v2013, 0.0
  %v2024 = vsel %vm112, %v2015, 0.0
  %v2025 = vsel %vm113, %v2016, 0.0
  %v2026 = vrot.slane %v2001, 1
  %v2027 = vrot.slane %v2002, 1
  %v2028 = vsel %vm118, %v2026, %v2027
  %v2029 = vrot.slane %v2003, 1
  %v2030 = vsel %vm118, %v2027, %v2029
  %v2031 = vrot.slane %v2004, 1
  %v2032 = vsel %vm118, %v2029, %v2031
  %v2038 = vsel %vm118, %v2031, %v2026
  %v2039 = vsel %vm136, %v2028, 0.0
  %v2040 = vsel %vm137, %v2030, 0.0
  %v2041 = vsel %vm138, %v2032, 0.0
  %v2042 = vsel %vm139, %v2038, 0.0
  %2043 = vrot.lane.b32.xlu0 %v2001, 32
  %v2044 = vpop.permute.xlu0 %2043
  %2045 = vrot.lane.b32.xlu0 %v2002, 32
  %v2046 = vpop.permute.xlu0 %2045
  %2047 = vrot.lane.b32.xlu0 %v2003, 32
  %v2048 = vpop.permute.xlu0 %2047
  %2049 = vrot.lane.b32.xlu0 %v2004, 32
  %v2050 = vpop.permute.xlu0 %2049
  %2059 = vrot.lane.b32.xlu0 %v2039, 64
  %v2060 = vpop.permute.xlu0 %2059
  %2061 = vrot.lane.b32.xlu0 %v2040, 64
  %v2062 = vpop.permute.xlu0 %2061
  %2063 = vrot.lane.b32.xlu0 %v2041, 64
  %v2064 = vpop.permute.xlu0 %2063
  %2065 = vrot.lane.b32.xlu0 %v2042, 64
  %v2066 = vpop.permute.xlu0 %2065
  %v2071 = vsel %vm172, %v2022, %v2044
  %v2072 = vsel %vm172, %v2023, %v2046
  %v2073 = vsel %vm172, %v2024, %v2048
  %v2074 = vsel %vm172, %v2025, %v2050
  %v2075 = vsel %vm177, %v2071, %v2060
  %v2076 = vsel %vm177, %v2072, %v2062
  %v2077 = vsel %vm177, %v2073, %v2064
  %v2078 = vsel %vm177, %v2074, %v2066
  %v2079 = vpack.c.bf16 %v2076, %v2075
  %v2080 = vpack.c.bf16 %v2078, %v2077
  %s2081 = scalar_lea.vmem %s1, 480
  %v2082 = vld [vmem:[%s2081] sm:$0xf]
  %v2083 = vld [vmem:[%s2081 + $0x4] sm:$0xf]
  %v2084 = vld [vmem:[%s2081 + $0x8] sm:$0xf]
  %v2085 = vld [vmem:[%s2081 + $0xc] sm:$0xf]
  %v2086 = vld [vmem:[%s2081 + $0x10] sm:$0xf]
  %v2087 = vld [vmem:[%s2081 + $0x14] sm:$0xf]
  %v2088 = vld [vmem:[%s2081 + $0x18] sm:$0xf]
  %v2089 = vld [vmem:[%s2081 + $0x1c] sm:$0xf]
  %v2090 = vld [vmem:[%s2081 + $0x20] sm:$0xf]
  %v2091 = vld [vmem:[%s2081 + $0x24] sm:$0xf]
  %v2092 = vld [vmem:[%s2081 + $0x28] sm:$0xf]
  %v2093 = vld [vmem:[%s2081 + $0x2c] sm:$0xf]
  %s2094 = scalar_lea.vmem %s2, 10
  %v2095 = vld [vmem:[%s2094] sm:$0x1]
  %v2097 = vperm.slane %v2095, 0
  %v2111 = vunpack.c.l.b16 %v2082
  %v2112 = vunpack.c.l.b16 %v2083
  %v2113 = vunpack.c.l.b16 %v2084
  %v2114 = vunpack.c.l.b16 %v2085
  %v2115 = vunpack.c.l.b16 %v2086
  %v2116 = vunpack.c.l.b16 %v2087
  %v2117 = vunpack.c.l.b16 %v2088
  %v2118 = vunpack.c.l.b16 %v2089
  %v2119 = vunpack.c.l.b16 %v2090
  %v2120 = vunpack.c.l.b16 %v2091
  %v2121 = vunpack.c.l.b16 %v2092
  %v2122 = vunpack.c.l.b16 %v2093
  %v2123 = vpack.c.b16 %v2112, %v2111
  %v2124 = vpack.c.b16 %v2114, %v2113
  %v2125 = vpack.c.b16 %v2116, %v2115
  %v2126 = vpack.c.b16 %v2118, %v2117
  %v2127 = vpack.c.b16 %v2120, %v2119
  %v2128 = vpack.c.b16 %v2122, %v2121
  %v2136 = vsel %vm236, %v2079, 0
  %v2139 = vsel %vm236, %v2080, 0
  %2141 = vmatpush.bf16.msra.mxu0 0
  %2142 = vmatpush.bf16.msra.mxu0 0
  %2143 = vmatpush.bf16.msra.mxu0 %v2128
  %2144 = vmatpush.bf16.msra.mxu0 %v2127
  %2145 = vmatpush.bf16.msra.mxu0 %v2126
  %2146 = vmatpush.bf16.msra.mxu0 %v2125
  %2147 = vmatpush.bf16.msra.mxu0 %v2124
  %2148 = vmatpush.bf16.msra.mxu0 %v2123
  %2149 = vmatmul.bf16.gmra.mxu0 %v2136
  %v2150 = vpop.f32.mrf.mxu0
  %v2151 = vadd.f32 %v2097, %v2150
  %v2152 = vpop.f32.mrf.mxu0
  %v2153 = vadd.f32 %v2097, %v2152
  %2154 = vmatmul.bf16.gmra.mxu0 %v2139
  %v2155 = vpop.f32.mrf.mxu0
  %v2156 = vadd.f32 %v2097, %v2155
  %v2157 = vpop.f32.mrf.mxu0
  %v2158 = vadd.f32 %v2097, %v2157
  %2159 = vdwg.mxu0
  %vm2160 = vcmp.ge.f32.partialorder %v2151, 0.0
  %vm2161 = vcmp.ge.f32.partialorder %v2153, 0.0
  %vm2162 = vcmp.ge.f32.partialorder %v2156, 0.0
  %vm2163 = vcmp.ge.f32.partialorder %v2158, 0.0
  %v2164 = vmul.f32 %v2151, 0.2
  %v2165 = vmul.f32 %v2153, 0.2
  %v2166 = vmul.f32 %v2156, 0.2
  %v2167 = vmul.f32 %v2158, 0.2
  %v2168 = vsel %vm2160, %v2151, %v2164
  %v2169 = vsel %vm2161, %v2153, %v2165
  %v2170 = vsel %vm2162, %v2156, %v2166
  %v2171 = vsel %vm2163, %v2158, %v2167
  %v2173 = vrot.slane %v2171, 7
  %v2178 = vrot.slane %v2168, 7
  %v2179 = vrot.slane %v2169, 7
  %v2180 = vsel %vm94, %v2178, %v2179
  %v2181 = vrot.slane %v2170, 7
  %v2182 = vsel %vm94, %v2179, %v2181
  %v2183 = vsel %vm94, %v2181, %v2173
  %v2188 = vsel %vm94, %v2173, %v2178
  %v2189 = vsel %vm110, %v2188, 0.0
  %v2190 = vsel %vm111, %v2180, 0.0
  %v2191 = vsel %vm112, %v2182, 0.0
  %v2192 = vsel %vm113, %v2183, 0.0
  %v2193 = vrot.slane %v2168, 1
  %v2194 = vrot.slane %v2169, 1
  %v2195 = vsel %vm118, %v2193, %v2194
  %v2196 = vrot.slane %v2170, 1
  %v2197 = vsel %vm118, %v2194, %v2196
  %v2198 = vrot.slane %v2171, 1
  %v2199 = vsel %vm118, %v2196, %v2198
  %v2205 = vsel %vm118, %v2198, %v2193
  %v2206 = vsel %vm136, %v2195, 0.0
  %v2207 = vsel %vm137, %v2197, 0.0
  %v2208 = vsel %vm138, %v2199, 0.0
  %v2209 = vsel %vm139, %v2205, 0.0
  %2210 = vrot.lane.b32.xlu0 %v2168, 32
  %v2211 = vpop.permute.xlu0 %2210
  %2212 = vrot.lane.b32.xlu0 %v2169, 32
  %v2213 = vpop.permute.xlu0 %2212
  %2214 = vrot.lane.b32.xlu0 %v2170, 32
  %v2215 = vpop.permute.xlu0 %2214
  %2216 = vrot.lane.b32.xlu0 %v2171, 32
  %v2217 = vpop.permute.xlu0 %2216
  %2226 = vrot.lane.b32.xlu0 %v2206, 64
  %v2227 = vpop.permute.xlu0 %2226
  %2228 = vrot.lane.b32.xlu0 %v2207, 64
  %v2229 = vpop.permute.xlu0 %2228
  %2230 = vrot.lane.b32.xlu0 %v2208, 64
  %v2231 = vpop.permute.xlu0 %2230
  %2232 = vrot.lane.b32.xlu0 %v2209, 64
  %v2233 = vpop.permute.xlu0 %2232
  %v2238 = vsel %vm172, %v2189, %v2211
  %v2239 = vsel %vm172, %v2190, %v2213
  %v2240 = vsel %vm172, %v2191, %v2215
  %v2241 = vsel %vm172, %v2192, %v2217
  %v2242 = vsel %vm177, %v2238, %v2227
  %v2243 = vsel %vm177, %v2239, %v2229
  %v2244 = vsel %vm177, %v2240, %v2231
  %v2245 = vsel %vm177, %v2241, %v2233
  %v2246 = vpack.c.bf16 %v2243, %v2242
  %v2247 = vpack.c.bf16 %v2245, %v2244
  %s2248 = scalar_lea.vmem %s1, 528
  %v2249 = vld [vmem:[%s2248] sm:$0xf]
  %v2250 = vld [vmem:[%s2248 + $0x4] sm:$0xf]
  %v2251 = vld [vmem:[%s2248 + $0x8] sm:$0xf]
  %v2252 = vld [vmem:[%s2248 + $0xc] sm:$0xf]
  %v2253 = vld [vmem:[%s2248 + $0x10] sm:$0xf]
  %v2254 = vld [vmem:[%s2248 + $0x14] sm:$0xf]
  %v2255 = vld [vmem:[%s2248 + $0x18] sm:$0xf]
  %v2256 = vld [vmem:[%s2248 + $0x1c] sm:$0xf]
  %v2257 = vld [vmem:[%s2248 + $0x20] sm:$0xf]
  %v2258 = vld [vmem:[%s2248 + $0x24] sm:$0xf]
  %v2259 = vld [vmem:[%s2248 + $0x28] sm:$0xf]
  %v2260 = vld [vmem:[%s2248 + $0x2c] sm:$0xf]
  %s2261 = scalar_lea.vmem %s2, 11
  %v2262 = vld [vmem:[%s2261] sm:$0x1]
  %v2264 = vperm.slane %v2262, 0
  %v2278 = vunpack.c.l.b16 %v2249
  %v2279 = vunpack.c.l.b16 %v2250
  %v2280 = vunpack.c.l.b16 %v2251
  %v2281 = vunpack.c.l.b16 %v2252
  %v2282 = vunpack.c.l.b16 %v2253
  %v2283 = vunpack.c.l.b16 %v2254
  %v2284 = vunpack.c.l.b16 %v2255
  %v2285 = vunpack.c.l.b16 %v2256
  %v2286 = vunpack.c.l.b16 %v2257
  %v2287 = vunpack.c.l.b16 %v2258
  %v2288 = vunpack.c.l.b16 %v2259
  %v2289 = vunpack.c.l.b16 %v2260
  %v2290 = vpack.c.b16 %v2279, %v2278
  %v2291 = vpack.c.b16 %v2281, %v2280
  %v2292 = vpack.c.b16 %v2283, %v2282
  %v2293 = vpack.c.b16 %v2285, %v2284
  %v2294 = vpack.c.b16 %v2287, %v2286
  %v2295 = vpack.c.b16 %v2289, %v2288
  %v2303 = vsel %vm236, %v2246, 0
  %v2306 = vsel %vm236, %v2247, 0
  %2308 = vmatpush.bf16.msra.mxu0 0
  %2309 = vmatpush.bf16.msra.mxu0 0
  %2310 = vmatpush.bf16.msra.mxu0 %v2295
  %2311 = vmatpush.bf16.msra.mxu0 %v2294
  %2312 = vmatpush.bf16.msra.mxu0 %v2293
  %2313 = vmatpush.bf16.msra.mxu0 %v2292
  %2314 = vmatpush.bf16.msra.mxu0 %v2291
  %2315 = vmatpush.bf16.msra.mxu0 %v2290
  %2316 = vmatmul.bf16.gmra.mxu0 %v2303
  %v2317 = vpop.f32.mrf.mxu0
  %v2318 = vadd.f32 %v2264, %v2317
  %v2319 = vpop.f32.mrf.mxu0
  %v2320 = vadd.f32 %v2264, %v2319
  %2321 = vmatmul.bf16.gmra.mxu0 %v2306
  %v2322 = vpop.f32.mrf.mxu0
  %v2323 = vadd.f32 %v2264, %v2322
  %v2324 = vpop.f32.mrf.mxu0
  %v2325 = vadd.f32 %v2264, %v2324
  %2326 = vdwg.mxu0
  %vm2327 = vcmp.ge.f32.partialorder %v2318, 0.0
  %vm2328 = vcmp.ge.f32.partialorder %v2320, 0.0
  %vm2329 = vcmp.ge.f32.partialorder %v2323, 0.0
  %vm2330 = vcmp.ge.f32.partialorder %v2325, 0.0
  %v2331 = vmul.f32 %v2318, 0.2
  %v2332 = vmul.f32 %v2320, 0.2
  %v2333 = vmul.f32 %v2323, 0.2
  %v2334 = vmul.f32 %v2325, 0.2
  %v2335 = vsel %vm2327, %v2318, %v2331
  %v2336 = vsel %vm2328, %v2320, %v2332
  %v2337 = vsel %vm2329, %v2323, %v2333
  %v2338 = vsel %vm2330, %v2325, %v2334
  %v2340 = vrot.slane %v2338, 7
  %v2345 = vrot.slane %v2335, 7
  %v2346 = vrot.slane %v2336, 7
  %v2347 = vsel %vm94, %v2345, %v2346
  %v2348 = vrot.slane %v2337, 7
  %v2349 = vsel %vm94, %v2346, %v2348
  %v2350 = vsel %vm94, %v2348, %v2340
  %v2355 = vsel %vm94, %v2340, %v2345
  %v2356 = vsel %vm110, %v2355, 0.0
  %v2357 = vsel %vm111, %v2347, 0.0
  %v2358 = vsel %vm112, %v2349, 0.0
  %v2359 = vsel %vm113, %v2350, 0.0
  %v2360 = vrot.slane %v2335, 1
  %v2361 = vrot.slane %v2336, 1
  %v2362 = vsel %vm118, %v2360, %v2361
  %v2363 = vrot.slane %v2337, 1
  %v2364 = vsel %vm118, %v2361, %v2363
  %v2365 = vrot.slane %v2338, 1
  %v2366 = vsel %vm118, %v2363, %v2365
  %v2372 = vsel %vm118, %v2365, %v2360
  %v2373 = vsel %vm136, %v2362, 0.0
  %v2374 = vsel %vm137, %v2364, 0.0
  %v2375 = vsel %vm138, %v2366, 0.0
  %v2376 = vsel %vm139, %v2372, 0.0
  %2377 = vrot.lane.b32.xlu0 %v2335, 32
  %v2378 = vpop.permute.xlu0 %2377
  %2379 = vrot.lane.b32.xlu0 %v2336, 32
  %v2380 = vpop.permute.xlu0 %2379
  %2381 = vrot.lane.b32.xlu0 %v2337, 32
  %v2382 = vpop.permute.xlu0 %2381
  %2383 = vrot.lane.b32.xlu0 %v2338, 32
  %v2384 = vpop.permute.xlu0 %2383
  %2393 = vrot.lane.b32.xlu0 %v2373, 64
  %v2394 = vpop.permute.xlu0 %2393
  %2395 = vrot.lane.b32.xlu0 %v2374, 64
  %v2396 = vpop.permute.xlu0 %2395
  %2397 = vrot.lane.b32.xlu0 %v2375, 64
  %v2398 = vpop.permute.xlu0 %2397
  %2399 = vrot.lane.b32.xlu0 %v2376, 64
  %v2400 = vpop.permute.xlu0 %2399
  %v2405 = vsel %vm172, %v2356, %v2378
  %v2406 = vsel %vm172, %v2357, %v2380
  %v2407 = vsel %vm172, %v2358, %v2382
  %v2408 = vsel %vm172, %v2359, %v2384
  %v2409 = vsel %vm177, %v2405, %v2394
  %v2410 = vsel %vm177, %v2406, %v2396
  %v2411 = vsel %vm177, %v2407, %v2398
  %v2412 = vsel %vm177, %v2408, %v2400
  %v2413 = vpack.c.bf16 %v2410, %v2409
  %v2414 = vpack.c.bf16 %v2412, %v2411
  %s2415 = scalar_lea.vmem %s1, 576
  %v2416 = vld [vmem:[%s2415] sm:$0xf]
  %v2417 = vld [vmem:[%s2415 + $0x4] sm:$0xf]
  %v2418 = vld [vmem:[%s2415 + $0x8] sm:$0xf]
  %v2419 = vld [vmem:[%s2415 + $0xc] sm:$0xf]
  %v2420 = vld [vmem:[%s2415 + $0x10] sm:$0xf]
  %v2421 = vld [vmem:[%s2415 + $0x14] sm:$0xf]
  %v2422 = vld [vmem:[%s2415 + $0x18] sm:$0xf]
  %v2423 = vld [vmem:[%s2415 + $0x1c] sm:$0xf]
  %v2424 = vld [vmem:[%s2415 + $0x20] sm:$0xf]
  %v2425 = vld [vmem:[%s2415 + $0x24] sm:$0xf]
  %v2426 = vld [vmem:[%s2415 + $0x28] sm:$0xf]
  %v2427 = vld [vmem:[%s2415 + $0x2c] sm:$0xf]
  %s2428 = scalar_lea.vmem %s2, 12
  %v2429 = vld [vmem:[%s2428] sm:$0x1]
  %v2431 = vperm.slane %v2429, 0
  %v2445 = vunpack.c.l.b16 %v2416
  %v2446 = vunpack.c.l.b16 %v2417
  %v2447 = vunpack.c.l.b16 %v2418
  %v2448 = vunpack.c.l.b16 %v2419
  %v2449 = vunpack.c.l.b16 %v2420
  %v2450 = vunpack.c.l.b16 %v2421
  %v2451 = vunpack.c.l.b16 %v2422
  %v2452 = vunpack.c.l.b16 %v2423
  %v2453 = vunpack.c.l.b16 %v2424
  %v2454 = vunpack.c.l.b16 %v2425
  %v2455 = vunpack.c.l.b16 %v2426
  %v2456 = vunpack.c.l.b16 %v2427
  %v2457 = vpack.c.b16 %v2446, %v2445
  %v2458 = vpack.c.b16 %v2448, %v2447
  %v2459 = vpack.c.b16 %v2450, %v2449
  %v2460 = vpack.c.b16 %v2452, %v2451
  %v2461 = vpack.c.b16 %v2454, %v2453
  %v2462 = vpack.c.b16 %v2456, %v2455
  %v2470 = vsel %vm236, %v2413, 0
  %v2473 = vsel %vm236, %v2414, 0
  %2475 = vmatpush.bf16.msra.mxu0 0
  %2476 = vmatpush.bf16.msra.mxu0 0
  %2477 = vmatpush.bf16.msra.mxu0 %v2462
  %2478 = vmatpush.bf16.msra.mxu0 %v2461
  %2479 = vmatpush.bf16.msra.mxu0 %v2460
  %2480 = vmatpush.bf16.msra.mxu0 %v2459
  %2481 = vmatpush.bf16.msra.mxu0 %v2458
  %2482 = vmatpush.bf16.msra.mxu0 %v2457
  %2483 = vmatmul.bf16.gmra.mxu0 %v2470
  %v2484 = vpop.f32.mrf.mxu0
  %v2485 = vadd.f32 %v2431, %v2484
  %v2486 = vpop.f32.mrf.mxu0
  %v2487 = vadd.f32 %v2431, %v2486
  %2488 = vmatmul.bf16.gmra.mxu0 %v2473
  %v2489 = vpop.f32.mrf.mxu0
  %v2490 = vadd.f32 %v2431, %v2489
  %v2491 = vpop.f32.mrf.mxu0
  %v2492 = vadd.f32 %v2431, %v2491
  %2493 = vdwg.mxu0
  %2498 = vrot.lane.b32.xlu0 %v2485, 32
  %v2499 = vpop.permute.xlu0 %2498
  %2500 = vrot.lane.b32.xlu0 %v2487, 32
  %v2501 = vpop.permute.xlu0 %2500
  %2502 = vrot.lane.b32.xlu0 %v2490, 32
  %v2503 = vpop.permute.xlu0 %2502
  %2504 = vrot.lane.b32.xlu0 %v2492, 32
  %v2505 = vpop.permute.xlu0 %2504
  %v2510 = vsel %vm172, %v1300, %v2499
  %v2511 = vsel %vm172, %v1303, %v2501
  %v2512 = vsel %vm172, %v1306, %v2503
  %v2513 = vsel %vm172, %v1309, %v2505
  %v2514 = vsel %vm177, %v2510, 0.0
  %v2515 = vsel %vm177, %v2511, 0.0
  %v2516 = vsel %vm177, %v2512, 0.0
  %v2517 = vsel %vm177, %v2513, 0.0
  %2518 = vst [vmem:[%s5] sm:$0xff] %v2514
  %2519 = vst [vmem:[%s5 + $0x8] sm:$0xff] %v2515
  %2520 = vst [vmem:[%s5 + $0x10] sm:$0xff] %v2516
  %2521 = vst [vmem:[%s5 + $0x18] sm:$0xff] %v2517
  %v2522 = vsel %vm177, %v1352, %v1339
  %vm2523 = vcmask 531456
  %v2524 = vsel %vm2523, %v2522, 0.0
  %2525 = vst [vmem:[%s6] sm:$0x1] %v2524
  // Predicated region
  $region22: #{forward.1} parent=0 // pred_check
    _
  $region23: #{forward.1} parent=0 // pred_check_branch
    %2527 = sbr.rel (0) target = $region25
  $region24: #{forward.1} parent=0 // pred_region
    _
  $region25: #{forward.1} parent=0 // pred_fallthru
    _
  // Predicated region
  $region26: #{forward.1} parent=0 // pred_check
    _
  $region27: #{forward.1} parent=0 // pred_check_branch
    %2529 = sbr.rel (0) target = $region29
  $region28: #{forward.1} parent=0 // pred_region
    _
  $region29: #{forward.1} parent=0 // pred_fallthru
    _
  // Predicated region
  $region30: #{forward.1} parent=0 // pred_check
    _
  $region31: #{forward.1} parent=0 // pred_check_branch
    %2531 = sbr.rel (0) target = $region33
  $region32: #{forward.1} parent=0 // pred_region
    _
  $region33: #{forward.1} parent=0 // pred_fallthru
    _
  // Predicated region
  $region34: #{forward.1} parent=0 // pred_check
    _
  $region35: #{forward.1} parent=0 // pred_check_branch
    %2533 = sbr.rel (0) target = $region37
  $region36: #{forward.1} parent=0 // pred_region
    _
  $region37: #{forward.1} parent=0 // pred_fallthru
    _

</llo_original>
